<compile_context>
chip_gen: v5e
topology: v5e:2x2
jax: 0.10.0
libtpu: 0.0.40
codegen_flags: <defaults>
</compile_context>

<pallas_src>
import functools

import jax
import jax.numpy as jnp
from jax.experimental import pallas as pl
from jax.experimental.pallas import tpu as pltpu


def _cdiv(a, b):
    return (a + b - 1) // b


def _round_up(n, m):
    return _cdiv(n, m) * m


def _baseline_nn_kernel(num_linears, x_ref, *refs):
    """Block-diagonal packed MLP + residual, batch-on-lanes.

    x_ref : (3R, TC) packed input tile (R batch sub-chunks stacked on
            sublanes, TC batch columns on lanes), f32.
    refs  : (W0, b0, W1, b1, ..., W_{L-1}, b_{L-1}, S, out_ref)
            W_i : (out_i*R, in_i*R) block-diagonal packed weight, f32.
            b_i : (out_i*R, 1) packed bias column (broadcasts over lanes).
                  The last bias already has the residual constant [1,0,0,0]
                  folded in.
            S   : (4R, 3R) block-diagonal residual selector (rows 2,3 of each
                  4-block pick x rows 0,1 of the matching 3-block).
    out_ref: (4R, TC).
    """
    out_ref = refs[-1]
    s = refs[-2][...]
    x = x_ref[...]  # (3R, TC), already f32

    h = x
    for layer in range(num_linears):
        w = refs[2 * layer][...]       # (out*R, in*R)
        b = refs[2 * layer + 1][...]   # (out*R, 1)
        h = jnp.dot(w, h, preferred_element_type=jnp.float32) + b
        if layer < num_linears - 1:
            h = jnp.maximum(h, 0.0)

    # Residual r = cat([1, 0, x0, x1]) per sample: the constant part lives in
    # the last bias; the linear part is one tiny MXU dot.  Single full-block
    # (unmasked) store of the (4R, TC) output.
    out_ref[...] = (
        h + jnp.dot(s, x, preferred_element_type=jnp.float32)
    ).astype(out_ref.dtype)


def baseline_nn_forward(x, weights, biases, *, replication=None, block_cols=1024):
    """x: (B, 3).  weights[i]: (out_i, in_i) (PyTorch nn.Linear layout).  biases[i]: (out_i,)."""
    assert x.ndim == 2 and x.shape[1] == 3
    num_linears = len(weights)
    hidden_dim = weights[0].shape[0]
    assert weights[0].shape[1] == 3 and weights[-1].shape[0] == 4
    B = x.shape[0]
    orig_dtype = x.dtype

    # Block-diagonal replication factor: pack R copies of each layer so the
    # dominant (H x H) matmuls present K = H*R (~256) to the MXU.
    if replication is None:
        replication = max(1, min(8, 256 // max(hidden_dim, 1)))
    R = replication

    # Lane (column) tiling of the packed batch: columns = ceil(B / R).
    cols_needed = _cdiv(max(B, 1), R)
    cols_128 = _round_up(cols_needed, 128)
    block_c = min(block_cols, cols_128)
    # v7x: prefer >= 2 grid steps so both TensorCores get work when there is
    # enough batch to split (irrelevant on single-TC v5e/v6e).
    if cols_128 // block_c < 2 and cols_128 >= 256:
        block_c = _round_up(_cdiv(cols_128, 2), 128)
    cols_p = _round_up(cols_needed, block_c)
    Bp = cols_p * R

    # Packed, batch-on-lanes input: (B, 3) -> (3, Bp) -> (3R, cols_p).
    # Sample index = r * cols_p + j maps to row block r, column j.
    x_f32 = jnp.pad(x.astype(jnp.float32), ((0, Bp - B), (0, 0)))
    x_packed = (
        x_f32.T.reshape(3, R, cols_p).transpose(1, 0, 2).reshape(3 * R, cols_p)
    )

    eye_r = jnp.eye(R, dtype=jnp.float32)

    # Fold the residual constant [1, 0, 0, 0] into the last layer's bias.
    b_last = biases[-1].astype(jnp.float32).at[0].add(1.0)
    all_biases = list(biases[:-1]) + [b_last]

    inputs = [x_packed]
    in_specs = [pl.BlockSpec((3 * R, block_c), lambda i: (0, i))]
    for w, b in zip(weights, all_biases):
        w_packed = jnp.kron(eye_r, w.astype(jnp.float32))               # (out*R, in*R)
        b_packed = jnp.tile(b.astype(jnp.float32), R).reshape(-1, 1)    # (out*R, 1)
        inputs += [w_packed, b_packed]
        # Constant index_maps: weights/biases are VMEM-resident, DMA'd once.
        in_specs += [
            pl.BlockSpec(w_packed.shape, lambda i: (0, 0)),
            pl.BlockSpec(b_packed.shape, lambda i: (0, 0)),
        ]

    # Residual selector: rows 2,3 of each 4-block pick x rows 0,1.
    s_block = jnp.zeros((4, 3), jnp.float32).at[2, 0].set(1.0).at[3, 1].set(1.0)
    s_packed = jnp.kron(eye_r, s_block)                                  # (4R, 3R)
    inputs.append(s_packed)
    in_specs.append(pl.BlockSpec(s_packed.shape, lambda i: (0, 0)))

    kernel = functools.partial(_baseline_nn_kernel, num_linears)
    out_packed = pl.pallas_call(
        kernel,
        grid=(cols_p // block_c,),
        out_shape=jax.ShapeDtypeStruct((4 * R, cols_p), jnp.float32),
        in_specs=in_specs,
        out_specs=pl.BlockSpec((4 * R, block_c), lambda i: (0, i)),
        compiler_params=pltpu.CompilerParams(
            dimension_semantics=("parallel",),  # megacore split of the batch grid
        ),
    )(*inputs)

    # Unpack (4R, cols_p) -> (4, Bp) -> (B, 4); drop the padded samples.
    out_t = out_packed.reshape(R, 4, cols_p).transpose(1, 0, 2).reshape(4, Bp)
    return out_t[:, :B].T.astype(orig_dtype)


def _init_params(key, hidden_layers, hidden_dim):
    """Deterministic init mimicking PyTorch Linear default (U(-1/sqrt(in), 1/sqrt(in)));
    weights stored in PyTorch layout (out_features, in_features)."""
    dims = [3] + [hidden_dim] * hidden_layers + [4]
    weights, biases = [], []
    for i in range(len(dims) - 1):
        fan_in, fan_out = dims[i], dims[i + 1]
        key, kw, kb = jax.random.split(key, 3)
        bound = 1.0 / (fan_in ** 0.5)
        weights.append(
            jax.random.uniform(kw, (fan_out, fan_in), jnp.float32, -bound, bound)
        )
        biases.append(
            jax.random.uniform(kb, (fan_out,), jnp.float32, -bound, bound)
        )
    return weights, biases


def _reference_forward(x, weights, biases):
    """Plain-JAX reference matching the PyTorch forward semantics."""
    h = x
    for i, (w, b) in enumerate(zip(weights, biases)):
        h = h @ w.T + b
        if i < len(weights) - 1:
            h = jnp.maximum(h, 0.0)
    B = x.shape[0]
    r = jnp.concatenate(
        [jnp.ones((B, 1), x.dtype), jnp.zeros((B, 1), x.dtype), x[:, :2]], axis=-1
    )
    return h + r


if __name__ == "__main__":
    hidden_layers = 3
    hidden_dim = 32

    key = jax.random.PRNGKey(0)
    key, kp, kx = jax.random.split(key, 3)
    weights, biases = _init_params(kp, hidden_layers, hidden_dim)

    # batch=8 (single tiny tile), batch=300 (padded tail within one tile),
    # batch=16389 (multi-step grid + padded tail).
    for batch in (8, 300, 16389):
        kx, sub = jax.random.split(kx)
        x = jax.random.normal(sub, (batch, 3), jnp.float32)

        out = jax.block_until_ready(baseline_nn_forward(x, weights, biases))
        ref = _reference_forward(x, weights, biases)

        assert out.shape == (batch, 4)
        assert jnp.allclose(out, ref, atol=1e-5, rtol=1e-5), "mismatch vs reference"

    print("KERNEL_OK")
</pallas_src>

<mosaic_0001>
module attributes {stable_mosaic.version = 11 : i64} {
  func.func @_baseline_nn_kernel(%arg0: i32, %arg1: memref<24x128xf32, #tpu.memory_space<vmem>>, %arg2: memref<256x24xf32, #tpu.memory_space<vmem>>, %arg3: memref<256x1xf32, #tpu.memory_space<vmem>>, %arg4: memref<256x256xf32, #tpu.memory_space<vmem>>, %arg5: memref<256x1xf32, #tpu.memory_space<vmem>>, %arg6: memref<256x256xf32, #tpu.memory_space<vmem>>, %arg7: memref<256x1xf32, #tpu.memory_space<vmem>>, %arg8: memref<32x256xf32, #tpu.memory_space<vmem>>, %arg9: memref<32x1xf32, #tpu.memory_space<vmem>>, %arg10: memref<32x24xf32, #tpu.memory_space<vmem>>, %arg11: memref<32x128xf32, #tpu.memory_space<vmem>>) attributes {dimension_semantics = [#tpu.dimension_semantics<parallel>], iteration_bounds = array<i64: 1>, scalar_prefetch = 0 : i64, scratch_operands = 0 : i64, tpu.core_type = #tpu.core_type<tc>, window_params = [{transform_indices = @transform_0, window_bounds = array<i64: 24, 128>}, {pipeline_mode = #tpu.pipeline_mode<synchronous>, transform_indices = @transform_1, window_bounds = array<i64: 256, 24>}, {pipeline_mode = #tpu.pipeline_mode<synchronous>, transform_indices = @transform_2, window_bounds = array<i64: 256, 1>}, {pipeline_mode = #tpu.pipeline_mode<synchronous>, transform_indices = @transform_3, window_bounds = array<i64: 256, 256>}, {pipeline_mode = #tpu.pipeline_mode<synchronous>, transform_indices = @transform_4, window_bounds = array<i64: 256, 1>}, {pipeline_mode = #tpu.pipeline_mode<synchronous>, transform_indices = @transform_5, window_bounds = array<i64: 256, 256>}, {pipeline_mode = #tpu.pipeline_mode<synchronous>, transform_indices = @transform_6, window_bounds = array<i64: 256, 1>}, {pipeline_mode = #tpu.pipeline_mode<synchronous>, transform_indices = @transform_7, window_bounds = array<i64: 32, 256>}, {pipeline_mode = #tpu.pipeline_mode<synchronous>, transform_indices = @transform_8, window_bounds = array<i64: 32, 1>}, {pipeline_mode = #tpu.pipeline_mode<synchronous>, transform_indices = @transform_9, window_bounds = array<i64: 32, 24>}, {transform_indices = @transform_10, window_bounds = array<i64: 32, 128>}]} {
    %c0 = arith.constant 0 : index
    %c0_0 = arith.constant 0 : index
    %0 = vector.load %arg10[%c0, %c0_0] : memref<32x24xf32, #tpu.memory_space<vmem>>, vector<32x24xf32>
    %c0_1 = arith.constant 0 : index
    %c0_2 = arith.constant 0 : index
    %1 = vector.load %arg1[%c0_1, %c0_2] : memref<24x128xf32, #tpu.memory_space<vmem>>, vector<24x128xf32>
    %c0_3 = arith.constant 0 : index
    %c0_4 = arith.constant 0 : index
    %2 = vector.load %arg2[%c0_3, %c0_4] : memref<256x24xf32, #tpu.memory_space<vmem>>, vector<256x24xf32>
    %c0_5 = arith.constant 0 : index
    %c0_6 = arith.constant 0 : index
    %3 = vector.load %arg3[%c0_5, %c0_6] : memref<256x1xf32, #tpu.memory_space<vmem>>, vector<256x1xf32>
    %cst = arith.constant dense<0.000000e+00> : vector<256x128xf32>
    %4 = tpu.matmul %2, %1, %cst {dimension_numbers = #tpu.dot_dimension_numbers<[1], [0], [0], [1], [0, 0, 1, 1], [], []>} : vector<256x24xf32>, vector<24x128xf32>, vector<256x128xf32> -> vector<256x128xf32>
    %5 = vector.broadcast %3 : vector<256x1xf32> to vector<256x128xf32>
    %6 = arith.addf %4, %5 : vector<256x128xf32>
    %cst_7 = arith.constant 0.000000e+00 : f32
    %7 = vector.broadcast %cst_7 : f32 to vector<256x128xf32>
    %8 = arith.maximumf %6, %7 : vector<256x128xf32>
    %c0_8 = arith.constant 0 : index
    %c0_9 = arith.constant 0 : index
    %9 = vector.load %arg4[%c0_8, %c0_9] : memref<256x256xf32, #tpu.memory_space<vmem>>, vector<256x256xf32>
    %c0_10 = arith.constant 0 : index
    %c0_11 = arith.constant 0 : index
    %10 = vector.load %arg5[%c0_10, %c0_11] : memref<256x1xf32, #tpu.memory_space<vmem>>, vector<256x1xf32>
    %cst_12 = arith.constant dense<0.000000e+00> : vector<256x128xf32>
    %11 = tpu.matmul %9, %8, %cst_12 {dimension_numbers = #tpu.dot_dimension_numbers<[1], [0], [0], [1], [0, 0, 1, 1], [], []>} : vector<256x256xf32>, vector<256x128xf32>, vector<256x128xf32> -> vector<256x128xf32>
    %12 = vector.broadcast %10 : vector<256x1xf32> to vector<256x128xf32>
    %13 = arith.addf %11, %12 : vector<256x128xf32>
    %cst_13 = arith.constant 0.000000e+00 : f32
    %14 = vector.broadcast %cst_13 : f32 to vector<256x128xf32>
    %15 = arith.maximumf %13, %14 : vector<256x128xf32>
    %c0_14 = arith.constant 0 : index
    %c0_15 = arith.constant 0 : index
    %16 = vector.load %arg6[%c0_14, %c0_15] : memref<256x256xf32, #tpu.memory_space<vmem>>, vector<256x256xf32>
    %c0_16 = arith.constant 0 : index
    %c0_17 = arith.constant 0 : index
    %17 = vector.load %arg7[%c0_16, %c0_17] : memref<256x1xf32, #tpu.memory_space<vmem>>, vector<256x1xf32>
    %cst_18 = arith.constant dense<0.000000e+00> : vector<256x128xf32>
    %18 = tpu.matmul %16, %15, %cst_18 {dimension_numbers = #tpu.dot_dimension_numbers<[1], [0], [0], [1], [0, 0, 1, 1], [], []>} : vector<256x256xf32>, vector<256x128xf32>, vector<256x128xf32> -> vector<256x128xf32>
    %19 = vector.broadcast %17 : vector<256x1xf32> to vector<256x128xf32>
    %20 = arith.addf %18, %19 : vector<256x128xf32>
    %cst_19 = arith.constant 0.000000e+00 : f32
    %21 = vector.broadcast %cst_19 : f32 to vector<256x128xf32>
    %22 = arith.maximumf %20, %21 : vector<256x128xf32>
    %c0_20 = arith.constant 0 : index
    %c0_21 = arith.constant 0 : index
    %23 = vector.load %arg8[%c0_20, %c0_21] : memref<32x256xf32, #tpu.memory_space<vmem>>, vector<32x256xf32>
    %c0_22 = arith.constant 0 : index
    %c0_23 = arith.constant 0 : index
    %24 = vector.load %arg9[%c0_22, %c0_23] : memref<32x1xf32, #tpu.memory_space<vmem>>, vector<32x1xf32>
    %cst_24 = arith.constant dense<0.000000e+00> : vector<32x128xf32>
    %25 = tpu.matmul %23, %22, %cst_24 {dimension_numbers = #tpu.dot_dimension_numbers<[1], [0], [0], [1], [0, 0, 1, 1], [], []>} : vector<32x256xf32>, vector<256x128xf32>, vector<32x128xf32> -> vector<32x128xf32>
    %26 = vector.broadcast %24 : vector<32x1xf32> to vector<32x128xf32>
    %27 = arith.addf %25, %26 : vector<32x128xf32>
    %cst_25 = arith.constant dense<0.000000e+00> : vector<32x128xf32>
    %28 = tpu.matmul %0, %1, %cst_25 {dimension_numbers = #tpu.dot_dimension_numbers<[1], [0], [0], [1], [0, 0, 1, 1], [], []>} : vector<32x24xf32>, vector<24x128xf32>, vector<32x128xf32> -> vector<32x128xf32>
    %29 = arith.addf %27, %28 : vector<32x128xf32>
    %c0_26 = arith.constant 0 : index
    %c0_27 = arith.constant 0 : index
    %30 = vector.load %arg11[%c0_26, %c0_27] : memref<32x128xf32, #tpu.memory_space<vmem>>, vector<32x128xf32>
    tpu.vector_store %arg11[%c0_26, %c0_27], %29 {strides = array<i32>} : memref<32x128xf32, #tpu.memory_space<vmem>>, vector<32x128xf32>,
    return
  }
  func.func @transform_0(%arg0: i32) -> (i32, i32) {
    %c0_i32 = arith.constant 0 : i32
    %c0_i32_0 = arith.constant 0 : i32
    return %c0_i32, %arg0 : i32, i32
  }
  func.func @transform_1(%arg0: i32) -> (i32, i32) {
    %c0_i32 = arith.constant 0 : i32
    %c0_i32_0 = arith.constant 0 : i32
    %c0_i32_1 = arith.constant 0 : i32
    return %c0_i32, %c0_i32_0 : i32, i32
  }
  func.func @transform_2(%arg0: i32) -> (i32, i32) {
    %c0_i32 = arith.constant 0 : i32
    %c0_i32_0 = arith.constant 0 : i32
    %c0_i32_1 = arith.constant 0 : i32
    return %c0_i32, %c0_i32_0 : i32, i32
  }
  func.func @transform_3(%arg0: i32) -> (i32, i32) {
    %c0_i32 = arith.constant 0 : i32
    %c0_i32_0 = arith.constant 0 : i32
    %c0_i32_1 = arith.constant 0 : i32
    return %c0_i32, %c0_i32_0 : i32, i32
  }
  func.func @transform_4(%arg0: i32) -> (i32, i32) {
    %c0_i32 = arith.constant 0 : i32
    %c0_i32_0 = arith.constant 0 : i32
    %c0_i32_1 = arith.constant 0 : i32
    return %c0_i32, %c0_i32_0 : i32, i32
  }
  func.func @transform_5(%arg0: i32) -> (i32, i32) {
    %c0_i32 = arith.constant 0 : i32
    %c0_i32_0 = arith.constant 0 : i32
    %c0_i32_1 = arith.constant 0 : i32
    return %c0_i32, %c0_i32_0 : i32, i32
  }
  func.func @transform_6(%arg0: i32) -> (i32, i32) {
    %c0_i32 = arith.constant 0 : i32
    %c0_i32_0 = arith.constant 0 : i32
    %c0_i32_1 = arith.constant 0 : i32
    return %c0_i32, %c0_i32_0 : i32, i32
  }
  func.func @transform_7(%arg0: i32) -> (i32, i32) {
    %c0_i32 = arith.constant 0 : i32
    %c0_i32_0 = arith.constant 0 : i32
    %c0_i32_1 = arith.constant 0 : i32
    return %c0_i32, %c0_i32_0 : i32, i32
  }
  func.func @transform_8(%arg0: i32) -> (i32, i32) {
    %c0_i32 = arith.constant 0 : i32
    %c0_i32_0 = arith.constant 0 : i32
    %c0_i32_1 = arith.constant 0 : i32
    return %c0_i32, %c0_i32_0 : i32, i32
  }
  func.func @transform_9(%arg0: i32) -> (i32, i32) {
    %c0_i32 = arith.constant 0 : i32
    %c0_i32_0 = arith.constant 0 : i32
    %c0_i32_1 = arith.constant 0 : i32
    return %c0_i32, %c0_i32_0 : i32, i32
  }
  func.func @transform_10(%arg0: i32) -> (i32, i32) {
    %c0_i32 = arith.constant 0 : i32
    %c0_i32_0 = arith.constant 0 : i32
    return %c0_i32, %arg0 : i32, i32
  }
}

</mosaic_0001>

<llo_original>
// kernel: tpu_custom_call.1
$region0: #{tpu_custom_call.1}
  #allocation0 [shape = 'u32[]', space=smem, size = 0x4, offset = 0x4, fixed_abs, tag = 'smem constant byte address 0x4 - core index']
  #allocation1 [shape = 'u32[72,128]{1,0:T(1,128)}', space=vmem, size = 0x9000, scoped, tag = 'internal scratch']
  %s0 = inlined_call_operand.hbm [shape: f32[24,128], index: 0, kind: input, shape index: {}]
  %s1 = inlined_call_operand.vmem [shape: f32[256,24], index: 1, kind: input, shape index: {}]
  %s2 = inlined_call_operand.vmem [shape: f32[256,1], index: 2, kind: input, shape index: {}]
  %s3 = inlined_call_operand.vmem [shape: f32[256,256], index: 3, kind: input, shape index: {}]
  %s4 = inlined_call_operand.vmem [shape: f32[256,1], index: 4, kind: input, shape index: {}]
  %s5 = inlined_call_operand.vmem [shape: f32[256,256], index: 5, kind: input, shape index: {}]
  %s6 = inlined_call_operand.vmem [shape: f32[256,1], index: 6, kind: input, shape index: {}]
  %s7 = inlined_call_operand.vmem [shape: f32[32,256], index: 7, kind: input, shape index: {}]
  %s8 = inlined_call_operand.vmem [shape: f32[32,1], index: 8, kind: input, shape index: {}]
  %s9 = inlined_call_operand.vmem [shape: f32[32,24], index: 9, kind: input, shape index: {}]
  %s10 = inlined_call_operand.hbm [shape: f32[32,128], index: 10, kind: output, shape index: {}]
  %s11 = sld [smem:[#allocation0]]
  $region54: #{tpu_custom_call.1} parent=0
    _
  %s13 = ssub.s32 1, %s11
  %s14 = scalar_select 0, %s13, %s11
  $region1: #{tpu_custom_call.1} parent=0
    #allocation2 [shape = 'u8[12288]{0}', space=vmem, size = 0x3000, scoped, tag = 'input window, operand 0, single buffered']
    #allocation3 [shape = 's32[1]{0}', space=sflag, size = 0x4, scoped, tag = 'scoped memory for tpu_custom_call.1']
    #allocation4 [shape = 's32[1]{0}', space=sflag, size = 0x4, scoped, tag = 'scoped memory for tpu_custom_call.1']
    #allocation5 [shape = 'u8[16384]{0}', space=vmem, size = 0x4000, scoped, tag = 'output window, operand 0, single buffered']
    %15 = vsyncpa [#allocation3], 0
    %16 = vsyncpa [#allocation4], 0
    // Predicated region
    $region2: #{tpu_custom_call.1} parent=1 // pred_check
      _
    $region3: #{tpu_custom_call.1} parent=1 // pred_check_branch
      %18 = sbr.rel (0) target = $region5
    $region4: #{tpu_custom_call.1} parent=1 // pred_region
      %20 = vsyncadd [#allocation3], 0
      %s21 = sshll.u32 %s0, 4
      %s22 = int_to_ptr.hbm [resolvable:$true] %s21
      %s23 = sshll.u32 [#allocation2], 4
      %s24 = int_to_ptr.vmem [resolvable:$true] %s23
      %29 = dma.hbm_to_vmem [thread:$0]  %s22, 384, %s24, [#allocation3], 128, 128, 8
    $region5: #{tpu_custom_call.1} parent=1 // pred_fallthru
      _
    // Predicated region
    $region6: #{tpu_custom_call.1} parent=1 // pred_check
      _
    $region7: #{tpu_custom_call.1} parent=1 // pred_check_branch
      %31 = sbr.rel (0) target = $region9
    $region8: #{tpu_custom_call.1} parent=1 // pred_region
      _
    $region9: #{tpu_custom_call.1} parent=1 // pred_fallthru
      _
    // Predicated region
    $region10: #{tpu_custom_call.1} parent=1 // pred_check
      _
    $region11: #{tpu_custom_call.1} parent=1 // pred_check_branch
      %33 = sbr.rel (0) target = $region13
    $region12: #{tpu_custom_call.1} parent=1 // pred_region
      _
    $region13: #{tpu_custom_call.1} parent=1 // pred_fallthru
      _
    // Predicated region
    $region14: #{tpu_custom_call.1} parent=1 // pred_check
      _
    $region15: #{tpu_custom_call.1} parent=1 // pred_check_branch
      %35 = sbr.rel (0) target = $region17
    $region16: #{tpu_custom_call.1} parent=1 // pred_region
      _
    $region17: #{tpu_custom_call.1} parent=1 // pred_fallthru
      _
    // Predicated region
    $region18: #{tpu_custom_call.1} parent=1 // pred_check
      _
    $region19: #{tpu_custom_call.1} parent=1 // pred_check_branch
      %37 = sbr.rel (0) target = $region21
    $region20: #{tpu_custom_call.1} parent=1 // pred_region
      _
    $region21: #{tpu_custom_call.1} parent=1 // pred_fallthru
      _
    // Predicated region
    $region22: #{tpu_custom_call.1} parent=1 // pred_check
      _
    $region23: #{tpu_custom_call.1} parent=1 // pred_check_branch
      %39 = sbr.rel (0) target = $region25
    $region24: #{tpu_custom_call.1} parent=1 // pred_region
      _
    $region25: #{tpu_custom_call.1} parent=1 // pred_fallthru
      _
    // Predicated region
    $region26: #{tpu_custom_call.1} parent=1 // pred_check
      _
    $region27: #{tpu_custom_call.1} parent=1 // pred_check_branch
      %41 = sbr.rel (0) target = $region29
    $region28: #{tpu_custom_call.1} parent=1 // pred_region
      _
    $region29: #{tpu_custom_call.1} parent=1 // pred_fallthru
      _
    // Predicated region
    $region30: #{tpu_custom_call.1} parent=1 // pred_check
      _
    $region31: #{tpu_custom_call.1} parent=1 // pred_check_branch
      %43 = sbr.rel (0) target = $region33
    $region32: #{tpu_custom_call.1} parent=1 // pred_region
      _
    $region33: #{tpu_custom_call.1} parent=1 // pred_fallthru
      _
    // Predicated region
    $region34: #{tpu_custom_call.1} parent=1 // pred_check
      _
    $region35: #{tpu_custom_call.1} parent=1 // pred_check_branch
      %45 = sbr.rel (0) target = $region37
    $region36: #{tpu_custom_call.1} parent=1 // pred_region
      _
    $region37: #{tpu_custom_call.1} parent=1 // pred_fallthru
      _
    // Predicated region
    $region38: #{tpu_custom_call.1} parent=1 // pred_check
      _
    $region39: #{tpu_custom_call.1} parent=1 // pred_check_branch
      %47 = sbr.rel (0) target = $region41
    $region40: #{tpu_custom_call.1} parent=1 // pred_region
      _
    $region41: #{tpu_custom_call.1} parent=1 // pred_fallthru
      _
    // Predicated region
    $region42: #{tpu_custom_call.1} parent=1 // pred_check
      _
    $region43: #{tpu_custom_call.1} parent=1 // pred_check_branch
      %49 = sbr.rel (0) target = $region45
    $region44: #{tpu_custom_call.1} parent=1 // pred_region
      %51 = dma.done [#allocation3], 384
    $region45: #{tpu_custom_call.1} parent=1 // pred_fallthru
      _
    %v52 = vld [vmem:[%s9] sm:$0xff]
    %v53 = vld [vmem:[%s9 + $0x8] sm:$0xff]
    %v54 = vld [vmem:[%s9 + $0x10] sm:$0xff]
    %v55 = vld [vmem:[%s9 + $0x18] sm:$0xff]
    %v56 = vld [vmem:[#allocation2] sm:$0xff]
    %v57 = vld [vmem:[#allocation2 + $0x8] sm:$0xff]
    %v58 = vld [vmem:[#allocation2 + $0x10] sm:$0xff]
    %v59 = vld [vmem:[%s1] sm:$0xff]
    %v60 = vld [vmem:[%s1 + $0x8] sm:$0xff]
    %v61 = vld [vmem:[%s1 + $0x10] sm:$0xff]
    %v62 = vld [vmem:[%s1 + $0x18] sm:$0xff]
    %v63 = vld [vmem:[%s1 + $0x20] sm:$0xff]
    %v64 = vld [vmem:[%s1 + $0x28] sm:$0xff]
    %v65 = vld [vmem:[%s1 + $0x30] sm:$0xff]
    %v66 = vld [vmem:[%s1 + $0x38] sm:$0xff]
    %v67 = vld [vmem:[%s1 + $0x40] sm:$0xff]
    %v68 = vld [vmem:[%s1 + $0x48] sm:$0xff]
    %v69 = vld [vmem:[%s1 + $0x50] sm:$0xff]
    %v70 = vld [vmem:[%s1 + $0x58] sm:$0xff]
    %v71 = vld [vmem:[%s1 + $0x60] sm:$0xff]
    %v72 = vld [vmem:[%s1 + $0x68] sm:$0xff]
    %v73 = vld [vmem:[%s1 + $0x70] sm:$0xff]
    %v74 = vld [vmem:[%s1 + $0x78] sm:$0xff]
    %v75 = vld [vmem:[%s1 + $0x80] sm:$0xff]
    %v76 = vld [vmem:[%s1 + $0x88] sm:$0xff]
    %v77 = vld [vmem:[%s1 + $0x90] sm:$0xff]
    %v78 = vld [vmem:[%s1 + $0x98] sm:$0xff]
    %v79 = vld [vmem:[%s1 + $0xa0] sm:$0xff]
    %v80 = vld [vmem:[%s1 + $0xa8] sm:$0xff]
    %v81 = vld [vmem:[%s1 + $0xb0] sm:$0xff]
    %v82 = vld [vmem:[%s1 + $0xb8] sm:$0xff]
    %v83 = vld [vmem:[%s1 + $0xc0] sm:$0xff]
    %v84 = vld [vmem:[%s1 + $0xc8] sm:$0xff]
    %v85 = vld [vmem:[%s1 + $0xd0] sm:$0xff]
    %v86 = vld [vmem:[%s1 + $0xd8] sm:$0xff]
    %v87 = vld [vmem:[%s1 + $0xe0] sm:$0xff]
    %v88 = vld [vmem:[%s1 + $0xe8] sm:$0xff]
    %v89 = vld [vmem:[%s1 + $0xf0] sm:$0xff]
    %v90 = vld [vmem:[%s1 + $0xf8] sm:$0xff]
    %v91 = vld [vmem:[%s2] sm:$0xff]
    %v92 = vld [vmem:[%s2 + $0x8] sm:$0xff]
    %v93 = vld [vmem:[%s2 + $0x10] sm:$0xff]
    %v94 = vld [vmem:[%s2 + $0x18] sm:$0xff]
    %v95 = vld [vmem:[%s2 + $0x20] sm:$0xff]
    %v96 = vld [vmem:[%s2 + $0x28] sm:$0xff]
    %v97 = vld [vmem:[%s2 + $0x30] sm:$0xff]
    %v98 = vld [vmem:[%s2 + $0x38] sm:$0xff]
    %v99 = vld [vmem:[%s2 + $0x40] sm:$0xff]
    %v100 = vld [vmem:[%s2 + $0x48] sm:$0xff]
    %v101 = vld [vmem:[%s2 + $0x50] sm:$0xff]
    %v102 = vld [vmem:[%s2 + $0x58] sm:$0xff]
    %v103 = vld [vmem:[%s2 + $0x60] sm:$0xff]
    %v104 = vld [vmem:[%s2 + $0x68] sm:$0xff]
    %v105 = vld [vmem:[%s2 + $0x70] sm:$0xff]
    %v106 = vld [vmem:[%s2 + $0x78] sm:$0xff]
    %v107 = vld [vmem:[%s2 + $0x80] sm:$0xff]
    %v108 = vld [vmem:[%s2 + $0x88] sm:$0xff]
    %v109 = vld [vmem:[%s2 + $0x90] sm:$0xff]
    %v110 = vld [vmem:[%s2 + $0x98] sm:$0xff]
    %v111 = vld [vmem:[%s2 + $0xa0] sm:$0xff]
    %v112 = vld [vmem:[%s2 + $0xa8] sm:$0xff]
    %v113 = vld [vmem:[%s2 + $0xb0] sm:$0xff]
    %v114 = vld [vmem:[%s2 + $0xb8] sm:$0xff]
    %v115 = vld [vmem:[%s2 + $0xc0] sm:$0xff]
    %v116 = vld [vmem:[%s2 + $0xc8] sm:$0xff]
    %v117 = vld [vmem:[%s2 + $0xd0] sm:$0xff]
    %v118 = vld [vmem:[%s2 + $0xd8] sm:$0xff]
    %v119 = vld [vmem:[%s2 + $0xe0] sm:$0xff]
    %v120 = vld [vmem:[%s2 + $0xe8] sm:$0xff]
    %v121 = vld [vmem:[%s2 + $0xf0] sm:$0xff]
    %v122 = vld [vmem:[%s2 + $0xf8] sm:$0xff]
    %124 = vset.pattern.permute.xlu0 0
    %125 = vperm.xlu0 %124, %v91
    %v126 = vpop.permute.xlu0 %125
    %129 = vset.pattern.permute.xlu0 0
    %130 = vperm.xlu0 %129, %v92
    %v131 = vpop.permute.xlu0 %130
    %134 = vset.pattern.permute.xlu0 0
    %135 = vperm.xlu0 %134, %v93
    %v136 = vpop.permute.xlu0 %135
    %139 = vset.pattern.permute.xlu0 0
    %140 = vperm.xlu0 %139, %v94
    %v141 = vpop.permute.xlu0 %140
    %144 = vset.pattern.permute.xlu0 0
    %145 = vperm.xlu0 %144, %v95
    %v146 = vpop.permute.xlu0 %145
    %149 = vset.pattern.permute.xlu0 0
    %150 = vperm.xlu0 %149, %v96
    %v151 = vpop.permute.xlu0 %150
    %154 = vset.pattern.permute.xlu0 0
    %155 = vperm.xlu0 %154, %v97
    %v156 = vpop.permute.xlu0 %155
    %159 = vset.pattern.permute.xlu0 0
    %160 = vperm.xlu0 %159, %v98
    %v161 = vpop.permute.xlu0 %160
    %164 = vset.pattern.permute.xlu0 0
    %165 = vperm.xlu0 %164, %v99
    %v166 = vpop.permute.xlu0 %165
    %169 = vset.pattern.permute.xlu0 0
    %170 = vperm.xlu0 %169, %v100
    %v171 = vpop.permute.xlu0 %170
    %174 = vset.pattern.permute.xlu0 0
    %175 = vperm.xlu0 %174, %v101
    %v176 = vpop.permute.xlu0 %175
    %179 = vset.pattern.permute.xlu0 0
    %180 = vperm.xlu0 %179, %v102
    %v181 = vpop.permute.xlu0 %180
    %184 = vset.pattern.permute.xlu0 0
    %185 = vperm.xlu0 %184, %v103
    %v186 = vpop.permute.xlu0 %185
    %189 = vset.pattern.permute.xlu0 0
    %190 = vperm.xlu0 %189, %v104
    %v191 = vpop.permute.xlu0 %190
    %194 = vset.pattern.permute.xlu0 0
    %195 = vperm.xlu0 %194, %v105
    %v196 = vpop.permute.xlu0 %195
    %199 = vset.pattern.permute.xlu0 0
    %200 = vperm.xlu0 %199, %v106
    %v201 = vpop.permute.xlu0 %200
    %204 = vset.pattern.permute.xlu0 0
    %205 = vperm.xlu0 %204, %v107
    %v206 = vpop.permute.xlu0 %205
    %209 = vset.pattern.permute.xlu0 0
    %210 = vperm.xlu0 %209, %v108
    %v211 = vpop.permute.xlu0 %210
    %214 = vset.pattern.permute.xlu0 0
    %215 = vperm.xlu0 %214, %v109
    %v216 = vpop.permute.xlu0 %215
    %219 = vset.pattern.permute.xlu0 0
    %220 = vperm.xlu0 %219, %v110
    %v221 = vpop.permute.xlu0 %220
    %224 = vset.pattern.permute.xlu0 0
    %225 = vperm.xlu0 %224, %v111
    %v226 = vpop.permute.xlu0 %225
    %229 = vset.pattern.permute.xlu0 0
    %230 = vperm.xlu0 %229, %v112
    %v231 = vpop.permute.xlu0 %230
    %234 = vset.pattern.permute.xlu0 0
    %235 = vperm.xlu0 %234, %v113
    %v236 = vpop.permute.xlu0 %235
    %239 = vset.pattern.permute.xlu0 0
    %240 = vperm.xlu0 %239, %v114
    %v241 = vpop.permute.xlu0 %240
    %244 = vset.pattern.permute.xlu0 0
    %245 = vperm.xlu0 %244, %v115
    %v246 = vpop.permute.xlu0 %245
    %249 = vset.pattern.permute.xlu0 0
    %250 = vperm.xlu0 %249, %v116
    %v251 = vpop.permute.xlu0 %250
    %254 = vset.pattern.permute.xlu0 0
    %255 = vperm.xlu0 %254, %v117
    %v256 = vpop.permute.xlu0 %255
    %259 = vset.pattern.permute.xlu0 0
    %260 = vperm.xlu0 %259, %v118
    %v261 = vpop.permute.xlu0 %260
    %264 = vset.pattern.permute.xlu0 0
    %265 = vperm.xlu0 %264, %v119
    %v266 = vpop.permute.xlu0 %265
    %269 = vset.pattern.permute.xlu0 0
    %270 = vperm.xlu0 %269, %v120
    %v271 = vpop.permute.xlu0 %270
    %274 = vset.pattern.permute.xlu0 0
    %275 = vperm.xlu0 %274, %v121
    %v276 = vpop.permute.xlu0 %275
    %279 = vset.pattern.permute.xlu0 0
    %280 = vperm.xlu0 %279, %v122
    %v281 = vpop.permute.xlu0 %280
    %vm283 = vcmask 195584
    %v285 = vsel %vm283, %v59, 0
    %v288 = vsel %vm283, %v60, 0
    %v291 = vsel %vm283, %v61, 0
    %v294 = vsel %vm283, %v62, 0
    %v297 = vsel %vm283, %v63, 0
    %v300 = vsel %vm283, %v64, 0
    %v303 = vsel %vm283, %v65, 0
    %v306 = vsel %vm283, %v66, 0
    %v309 = vsel %vm283, %v67, 0
    %v312 = vsel %vm283, %v68, 0
    %v315 = vsel %vm283, %v69, 0
    %v318 = vsel %vm283, %v70, 0
    %v321 = vsel %vm283, %v71, 0
    %v324 = vsel %vm283, %v72, 0
    %v327 = vsel %vm283, %v73, 0
    %v330 = vsel %vm283, %v74, 0
    %v333 = vsel %vm283, %v75, 0
    %v336 = vsel %vm283, %v76, 0
    %v339 = vsel %vm283, %v77, 0
    %v342 = vsel %vm283, %v78, 0
    %v345 = vsel %vm283, %v79, 0
    %v348 = vsel %vm283, %v80, 0
    %v351 = vsel %vm283, %v81, 0
    %v354 = vsel %vm283, %v82, 0
    %v357 = vsel %vm283, %v83, 0
    %v360 = vsel %vm283, %v84, 0
    %v363 = vsel %vm283, %v85, 0
    %v366 = vsel %vm283, %v86, 0
    %v369 = vsel %vm283, %v87, 0
    %v372 = vsel %vm283, %v88, 0
    %v375 = vsel %vm283, %v89, 0
    %v378 = vsel %vm283, %v90, 0
    %380 = vmatpush.msra.mxu0 0.0
    %381 = vmatpush.msra.mxu0 0.0
    %382 = vmatpush.msra.mxu0 0.0
    %383 = vmatpush.msra.mxu0 0.0
    %384 = vmatpush.msra.mxu0 0.0
    %385 = vmatpush.msra.mxu0 0.0
    %386 = vmatpush.msra.mxu0 0.0
    %387 = vmatpush.msra.mxu0 0.0
    %388 = vmatpush.msra.mxu0 0.0
    %389 = vmatpush.msra.mxu0 0.0
    %390 = vmatpush.msra.mxu0 0.0
    %391 = vmatpush.msra.mxu0 0.0
    %392 = vmatpush.msra.mxu0 0.0
    %393 = vmatpush.msra.mxu0 %v58
    %394 = vmatpush.msra.mxu0 %v57
    %395 = vmatpush.msra.mxu0 %v56
    %396 = vmatmul.f32.gmra.mxu0 %v285
    %v397 = vpop.f32.mrf.mxu0
    %v398 = vadd.f32 %v126, %v397
    %399 = vmatmul.f32.gmra.mxu0 %v288
    %v400 = vpop.f32.mrf.mxu0
    %v401 = vadd.f32 %v131, %v400
    %402 = vmatmul.f32.gmra.mxu0 %v291
    %v403 = vpop.f32.mrf.mxu0
    %v404 = vadd.f32 %v136, %v403
    %405 = vmatmul.f32.gmra.mxu0 %v294
    %v406 = vpop.f32.mrf.mxu0
    %v407 = vadd.f32 %v141, %v406
    %408 = vmatmul.f32.gmra.mxu0 %v297
    %v409 = vpop.f32.mrf.mxu0
    %v410 = vadd.f32 %v146, %v409
    %411 = vmatmul.f32.gmra.mxu0 %v300
    %v412 = vpop.f32.mrf.mxu0
    %v413 = vadd.f32 %v151, %v412
    %414 = vmatmul.f32.gmra.mxu0 %v303
    %v415 = vpop.f32.mrf.mxu0
    %v416 = vadd.f32 %v156, %v415
    %417 = vmatmul.f32.gmra.mxu0 %v306
    %v418 = vpop.f32.mrf.mxu0
    %v419 = vadd.f32 %v161, %v418
    %420 = vmatmul.f32.gmra.mxu0 %v309
    %v421 = vpop.f32.mrf.mxu0
    %v422 = vadd.f32 %v166, %v421
    %423 = vmatmul.f32.gmra.mxu0 %v312
    %v424 = vpop.f32.mrf.mxu0
    %v425 = vadd.f32 %v171, %v424
    %426 = vmatmul.f32.gmra.mxu0 %v315
    %v427 = vpop.f32.mrf.mxu0
    %v428 = vadd.f32 %v176, %v427
    %429 = vmatmul.f32.gmra.mxu0 %v318
    %v430 = vpop.f32.mrf.mxu0
    %v431 = vadd.f32 %v181, %v430
    %432 = vmatmul.f32.gmra.mxu0 %v321
    %v433 = vpop.f32.mrf.mxu0
    %v434 = vadd.f32 %v186, %v433
    %435 = vmatmul.f32.gmra.mxu0 %v324
    %v436 = vpop.f32.mrf.mxu0
    %v437 = vadd.f32 %v191, %v436
    %438 = vmatmul.f32.gmra.mxu0 %v327
    %v439 = vpop.f32.mrf.mxu0
    %v440 = vadd.f32 %v196, %v439
    %441 = vmatmul.f32.gmra.mxu0 %v330
    %v442 = vpop.f32.mrf.mxu0
    %v443 = vadd.f32 %v201, %v442
    %444 = vmatmul.f32.gmra.mxu0 %v333
    %v445 = vpop.f32.mrf.mxu0
    %v446 = vadd.f32 %v206, %v445
    %447 = vmatmul.f32.gmra.mxu0 %v336
    %v448 = vpop.f32.mrf.mxu0
    %v449 = vadd.f32 %v211, %v448
    %450 = vmatmul.f32.gmra.mxu0 %v339
    %v451 = vpop.f32.mrf.mxu0
    %v452 = vadd.f32 %v216, %v451
    %453 = vmatmul.f32.gmra.mxu0 %v342
    %v454 = vpop.f32.mrf.mxu0
    %v455 = vadd.f32 %v221, %v454
    %456 = vmatmul.f32.gmra.mxu0 %v345
    %v457 = vpop.f32.mrf.mxu0
    %v458 = vadd.f32 %v226, %v457
    %459 = vmatmul.f32.gmra.mxu0 %v348
    %v460 = vpop.f32.mrf.mxu0
    %v461 = vadd.f32 %v231, %v460
    %462 = vmatmul.f32.gmra.mxu0 %v351
    %v463 = vpop.f32.mrf.mxu0
    %v464 = vadd.f32 %v236, %v463
    %465 = vmatmul.f32.gmra.mxu0 %v354
    %v466 = vpop.f32.mrf.mxu0
    %v467 = vadd.f32 %v241, %v466
    %468 = vmatmul.f32.gmra.mxu0 %v357
    %v469 = vpop.f32.mrf.mxu0
    %v470 = vadd.f32 %v246, %v469
    %471 = vmatmul.f32.gmra.mxu0 %v360
    %v472 = vpop.f32.mrf.mxu0
    %v473 = vadd.f32 %v251, %v472
    %474 = vmatmul.f32.gmra.mxu0 %v363
    %v475 = vpop.f32.mrf.mxu0
    %v476 = vadd.f32 %v256, %v475
    %477 = vmatmul.f32.gmra.mxu0 %v366
    %v478 = vpop.f32.mrf.mxu0
    %v479 = vadd.f32 %v261, %v478
    %480 = vmatmul.f32.gmra.mxu0 %v369
    %v481 = vpop.f32.mrf.mxu0
    %v482 = vadd.f32 %v266, %v481
    %483 = vmatmul.f32.gmra.mxu0 %v372
    %v484 = vpop.f32.mrf.mxu0
    %v485 = vadd.f32 %v271, %v484
    %486 = vmatmul.f32.gmra.mxu0 %v375
    %v487 = vpop.f32.mrf.mxu0
    %v488 = vadd.f32 %v276, %v487
    %489 = vmatmul.f32.gmra.mxu0 %v378
    %v490 = vpop.f32.mrf.mxu0
    %v491 = vadd.f32 %v281, %v490
    %492 = vdwg.mxu0
    %v493 = vmax.f32 %v398, 0.0
    %v494 = vmax.f32 %v401, 0.0
    %v495 = vmax.f32 %v404, 0.0
    %v496 = vmax.f32 %v407, 0.0
    %v497 = vmax.f32 %v410, 0.0
    %v498 = vmax.f32 %v413, 0.0
    %v499 = vmax.f32 %v416, 0.0
    %v500 = vmax.f32 %v419, 0.0
    %v501 = vmax.f32 %v422, 0.0
    %v502 = vmax.f32 %v425, 0.0
    %v503 = vmax.f32 %v428, 0.0
    %v504 = vmax.f32 %v431, 0.0
    %v505 = vmax.f32 %v434, 0.0
    %v506 = vmax.f32 %v437, 0.0
    %v507 = vmax.f32 %v440, 0.0
    %v508 = vmax.f32 %v443, 0.0
    %v509 = vmax.f32 %v446, 0.0
    %v510 = vmax.f32 %v449, 0.0
    %v511 = vmax.f32 %v452, 0.0
    %v512 = vmax.f32 %v455, 0.0
    %v513 = vmax.f32 %v458, 0.0
    %v514 = vmax.f32 %v461, 0.0
    %v515 = vmax.f32 %v464, 0.0
    %v516 = vmax.f32 %v467, 0.0
    %v517 = vmax.f32 %v470, 0.0
    %v518 = vmax.f32 %v473, 0.0
    %v519 = vmax.f32 %v476, 0.0
    %v520 = vmax.f32 %v479, 0.0
    %v521 = vmax.f32 %v482, 0.0
    %v522 = vmax.f32 %v485, 0.0
    %v523 = vmax.f32 %v488, 0.0
    %v524 = vmax.f32 %v491, 0.0
    %v525 = vld [vmem:[%s3] sm:$0xff]
    %v526 = vld [vmem:[%s3 + $0x8] sm:$0xff]
    %v527 = vld [vmem:[%s3 + $0x10] sm:$0xff]
    %v528 = vld [vmem:[%s3 + $0x18] sm:$0xff]
    %v529 = vld [vmem:[%s3 + $0x20] sm:$0xff]
    %v530 = vld [vmem:[%s3 + $0x28] sm:$0xff]
    %v531 = vld [vmem:[%s3 + $0x30] sm:$0xff]
    %v532 = vld [vmem:[%s3 + $0x38] sm:$0xff]
    %v533 = vld [vmem:[%s3 + $0x40] sm:$0xff]
    %v534 = vld [vmem:[%s3 + $0x48] sm:$0xff]
    %v535 = vld [vmem:[%s3 + $0x50] sm:$0xff]
    %v536 = vld [vmem:[%s3 + $0x58] sm:$0xff]
    %v537 = vld [vmem:[%s3 + $0x60] sm:$0xff]
    %v538 = vld [vmem:[%s3 + $0x68] sm:$0xff]
    %v539 = vld [vmem:[%s3 + $0x70] sm:$0xff]
    %v540 = vld [vmem:[%s3 + $0x78] sm:$0xff]
    %v541 = vld [vmem:[%s3 + $0x80] sm:$0xff]
    %v542 = vld [vmem:[%s3 + $0x88] sm:$0xff]
    %v543 = vld [vmem:[%s3 + $0x90] sm:$0xff]
    %v544 = vld [vmem:[%s3 + $0x98] sm:$0xff]
    %v545 = vld [vmem:[%s3 + $0xa0] sm:$0xff]
    %v546 = vld [vmem:[%s3 + $0xa8] sm:$0xff]
    %v547 = vld [vmem:[%s3 + $0xb0] sm:$0xff]
    %v548 = vld [vmem:[%s3 + $0xb8] sm:$0xff]
    %v549 = vld [vmem:[%s3 + $0xc0] sm:$0xff]
    %v550 = vld [vmem:[%s3 + $0xc8] sm:$0xff]
    %v551 = vld [vmem:[%s3 + $0xd0] sm:$0xff]
    %v552 = vld [vmem:[%s3 + $0xd8] sm:$0xff]
    %v553 = vld [vmem:[%s3 + $0xe0] sm:$0xff]
    %v554 = vld [vmem:[%s3 + $0xe8] sm:$0xff]
    %v555 = vld [vmem:[%s3 + $0xf0] sm:$0xff]
    %v556 = vld [vmem:[%s3 + $0xf8] sm:$0xff]
    %v557 = vld [vmem:[%s3 + $0x100] sm:$0xff]
    %v558 = vld [vmem:[%s3 + $0x108] sm:$0xff]
    %v559 = vld [vmem:[%s3 + $0x110] sm:$0xff]
    %v560 = vld [vmem:[%s3 + $0x118] sm:$0xff]
    %v561 = vld [vmem:[%s3 + $0x120] sm:$0xff]
    %v562 = vld [vmem:[%s3 + $0x128] sm:$0xff]
    %v563 = vld [vmem:[%s3 + $0x130] sm:$0xff]
    %v564 = vld [vmem:[%s3 + $0x138] sm:$0xff]
    %v565 = vld [vmem:[%s3 + $0x140] sm:$0xff]
    %v566 = vld [vmem:[%s3 + $0x148] sm:$0xff]
    %v567 = vld [vmem:[%s3 + $0x150] sm:$0xff]
    %v568 = vld [vmem:[%s3 + $0x158] sm:$0xff]
    %v569 = vld [vmem:[%s3 + $0x160] sm:$0xff]
    %v570 = vld [vmem:[%s3 + $0x168] sm:$0xff]
    %v571 = vld [vmem:[%s3 + $0x170] sm:$0xff]
    %v572 = vld [vmem:[%s3 + $0x178] sm:$0xff]
    %v573 = vld [vmem:[%s3 + $0x180] sm:$0xff]
    %v574 = vld [vmem:[%s3 + $0x188] sm:$0xff]
    %v575 = vld [vmem:[%s3 + $0x190] sm:$0xff]
    %v576 = vld [vmem:[%s3 + $0x198] sm:$0xff]
    %v577 = vld [vmem:[%s3 + $0x1a0] sm:$0xff]
    %v578 = vld [vmem:[%s3 + $0x1a8] sm:$0xff]
    %v579 = vld [vmem:[%s3 + $0x1b0] sm:$0xff]
    %v580 = vld [vmem:[%s3 + $0x1b8] sm:$0xff]
    %v581 = vld [vmem:[%s3 + $0x1c0] sm:$0xff]
    %v582 = vld [vmem:[%s3 + $0x1c8] sm:$0xff]
    %v583 = vld [vmem:[%s3 + $0x1d0] sm:$0xff]
    %v584 = vld [vmem:[%s3 + $0x1d8] sm:$0xff]
    %v585 = vld [vmem:[%s3 + $0x1e0] sm:$0xff]
    %v586 = vld [vmem:[%s3 + $0x1e8] sm:$0xff]
    %v587 = vld [vmem:[%s3 + $0x1f0] sm:$0xff]
    %v588 = vld [vmem:[%s3 + $0x1f8] sm:$0xff]
    %v589 = vld [vmem:[%s4] sm:$0xff]
    %v590 = vld [vmem:[%s4 + $0x8] sm:$0xff]
    %v591 = vld [vmem:[%s4 + $0x10] sm:$0xff]
    %v592 = vld [vmem:[%s4 + $0x18] sm:$0xff]
    %v593 = vld [vmem:[%s4 + $0x20] sm:$0xff]
    %v594 = vld [vmem:[%s4 + $0x28] sm:$0xff]
    %v595 = vld [vmem:[%s4 + $0x30] sm:$0xff]
    %v596 = vld [vmem:[%s4 + $0x38] sm:$0xff]
    %v597 = vld [vmem:[%s4 + $0x40] sm:$0xff]
    %v598 = vld [vmem:[%s4 + $0x48] sm:$0xff]
    %v599 = vld [vmem:[%s4 + $0x50] sm:$0xff]
    %v600 = vld [vmem:[%s4 + $0x58] sm:$0xff]
    %v601 = vld [vmem:[%s4 + $0x60] sm:$0xff]
    %v602 = vld [vmem:[%s4 + $0x68] sm:$0xff]
    %v603 = vld [vmem:[%s4 + $0x70] sm:$0xff]
    %v604 = vld [vmem:[%s4 + $0x78] sm:$0xff]
    %v605 = vld [vmem:[%s4 + $0x80] sm:$0xff]
    %v606 = vld [vmem:[%s4 + $0x88] sm:$0xff]
    %v607 = vld [vmem:[%s4 + $0x90] sm:$0xff]
    %v608 = vld [vmem:[%s4 + $0x98] sm:$0xff]
    %v609 = vld [vmem:[%s4 + $0xa0] sm:$0xff]
    %v610 = vld [vmem:[%s4 + $0xa8] sm:$0xff]
    %v611 = vld [vmem:[%s4 + $0xb0] sm:$0xff]
    %v612 = vld [vmem:[%s4 + $0xb8] sm:$0xff]
    %v613 = vld [vmem:[%s4 + $0xc0] sm:$0xff]
    %v614 = vld [vmem:[%s4 + $0xc8] sm:$0xff]
    %v615 = vld [vmem:[%s4 + $0xd0] sm:$0xff]
    %v616 = vld [vmem:[%s4 + $0xd8] sm:$0xff]
    %v617 = vld [vmem:[%s4 + $0xe0] sm:$0xff]
    %v618 = vld [vmem:[%s4 + $0xe8] sm:$0xff]
    %v619 = vld [vmem:[%s4 + $0xf0] sm:$0xff]
    %v620 = vld [vmem:[%s4 + $0xf8] sm:$0xff]
    %622 = vset.pattern.permute.xlu0 0
    %623 = vperm.xlu0 %622, %v589
    %v624 = vpop.permute.xlu0 %623
    %627 = vset.pattern.permute.xlu0 0
    %628 = vperm.xlu0 %627, %v590
    %v629 = vpop.permute.xlu0 %628
    %632 = vset.pattern.permute.xlu0 0
    %633 = vperm.xlu0 %632, %v591
    %v634 = vpop.permute.xlu0 %633
    %637 = vset.pattern.permute.xlu0 0
    %638 = vperm.xlu0 %637, %v592
    %v639 = vpop.permute.xlu0 %638
    %642 = vset.pattern.permute.xlu0 0
    %643 = vperm.xlu0 %642, %v593
    %v644 = vpop.permute.xlu0 %643
    %647 = vset.pattern.permute.xlu0 0
    %648 = vperm.xlu0 %647, %v594
    %v649 = vpop.permute.xlu0 %648
    %652 = vset.pattern.permute.xlu0 0
    %653 = vperm.xlu0 %652, %v595
    %v654 = vpop.permute.xlu0 %653
    %657 = vset.pattern.permute.xlu0 0
    %658 = vperm.xlu0 %657, %v596
    %v659 = vpop.permute.xlu0 %658
    %662 = vset.pattern.permute.xlu0 0
    %663 = vperm.xlu0 %662, %v597
    %v664 = vpop.permute.xlu0 %663
    %667 = vset.pattern.permute.xlu0 0
    %668 = vperm.xlu0 %667, %v598
    %v669 = vpop.permute.xlu0 %668
    %672 = vset.pattern.permute.xlu0 0
    %673 = vperm.xlu0 %672, %v599
    %v674 = vpop.permute.xlu0 %673
    %677 = vset.pattern.permute.xlu0 0
    %678 = vperm.xlu0 %677, %v600
    %v679 = vpop.permute.xlu0 %678
    %682 = vset.pattern.permute.xlu0 0
    %683 = vperm.xlu0 %682, %v601
    %v684 = vpop.permute.xlu0 %683
    %687 = vset.pattern.permute.xlu0 0
    %688 = vperm.xlu0 %687, %v602
    %v689 = vpop.permute.xlu0 %688
    %692 = vset.pattern.permute.xlu0 0
    %693 = vperm.xlu0 %692, %v603
    %v694 = vpop.permute.xlu0 %693
    %697 = vset.pattern.permute.xlu0 0
    %698 = vperm.xlu0 %697, %v604
    %v699 = vpop.permute.xlu0 %698
    %702 = vset.pattern.permute.xlu0 0
    %703 = vperm.xlu0 %702, %v605
    %v704 = vpop.permute.xlu0 %703
    %707 = vset.pattern.permute.xlu0 0
    %708 = vperm.xlu0 %707, %v606
    %v709 = vpop.permute.xlu0 %708
    %712 = vset.pattern.permute.xlu0 0
    %713 = vperm.xlu0 %712, %v607
    %v714 = vpop.permute.xlu0 %713
    %717 = vset.pattern.permute.xlu0 0
    %718 = vperm.xlu0 %717, %v608
    %v719 = vpop.permute.xlu0 %718
    %722 = vset.pattern.permute.xlu0 0
    %723 = vperm.xlu0 %722, %v609
    %v724 = vpop.permute.xlu0 %723
    %727 = vset.pattern.permute.xlu0 0
    %728 = vperm.xlu0 %727, %v610
    %v729 = vpop.permute.xlu0 %728
    %732 = vset.pattern.permute.xlu0 0
    %733 = vperm.xlu0 %732, %v611
    %v734 = vpop.permute.xlu0 %733
    %737 = vset.pattern.permute.xlu0 0
    %738 = vperm.xlu0 %737, %v612
    %v739 = vpop.permute.xlu0 %738
    %742 = vset.pattern.permute.xlu0 0
    %743 = vperm.xlu0 %742, %v613
    %v744 = vpop.permute.xlu0 %743
    %747 = vset.pattern.permute.xlu0 0
    %748 = vperm.xlu0 %747, %v614
    %v749 = vpop.permute.xlu0 %748
    %752 = vset.pattern.permute.xlu0 0
    %753 = vperm.xlu0 %752, %v615
    %v754 = vpop.permute.xlu0 %753
    %757 = vset.pattern.permute.xlu0 0
    %758 = vperm.xlu0 %757, %v616
    %v759 = vpop.permute.xlu0 %758
    %762 = vset.pattern.permute.xlu0 0
    %763 = vperm.xlu0 %762, %v617
    %v764 = vpop.permute.xlu0 %763
    %767 = vset.pattern.permute.xlu0 0
    %768 = vperm.xlu0 %767, %v618
    %v769 = vpop.permute.xlu0 %768
    %772 = vset.pattern.permute.xlu0 0
    %773 = vperm.xlu0 %772, %v619
    %v774 = vpop.permute.xlu0 %773
    %777 = vset.pattern.permute.xlu0 0
    %778 = vperm.xlu0 %777, %v620
    %v779 = vpop.permute.xlu0 %778
    %781 = vmatpush.msra.mxu0 %v508
    %782 = vmatpush.msra.mxu0 %v507
    %783 = vmatpush.msra.mxu0 %v506
    %784 = vmatpush.msra.mxu0 %v505
    %785 = vmatpush.msra.mxu0 %v504
    %786 = vmatpush.msra.mxu0 %v503
    %787 = vmatpush.msra.mxu0 %v502
    %788 = vmatpush.msra.mxu0 %v501
    %789 = vmatpush.msra.mxu0 %v500
    %790 = vmatpush.msra.mxu0 %v499
    %791 = vmatpush.msra.mxu0 %v498
    %792 = vmatpush.msra.mxu0 %v497
    %793 = vmatpush.msra.mxu0 %v496
    %794 = vmatpush.msra.mxu0 %v495
    %795 = vmatpush.msra.mxu0 %v494
    %796 = vmatpush.msra.mxu0 %v493
    %797 = vmatmul.f32.gmra.mxu0 %v525
    %v798 = vpop.f32.mrf.mxu0
    %v799 = vadd.f32 %v624, %v798
    %800 = vmatmul.f32.gmra.mxu0 %v527
    %v801 = vpop.f32.mrf.mxu0
    %v802 = vadd.f32 %v629, %v801
    %803 = vmatmul.f32.gmra.mxu0 %v529
    %v804 = vpop.f32.mrf.mxu0
    %v805 = vadd.f32 %v634, %v804
    %806 = vmatmul.f32.gmra.mxu0 %v531
    %v807 = vpop.f32.mrf.mxu0
    %v808 = vadd.f32 %v639, %v807
    %809 = vmatmul.f32.gmra.mxu0 %v533
    %v810 = vpop.f32.mrf.mxu0
    %v811 = vadd.f32 %v644, %v810
    %812 = vmatmul.f32.gmra.mxu0 %v535
    %v813 = vpop.f32.mrf.mxu0
    %v814 = vadd.f32 %v649, %v813
    %815 = vmatmul.f32.gmra.mxu0 %v537
    %v816 = vpop.f32.mrf.mxu0
    %v817 = vadd.f32 %v654, %v816
    %818 = vmatmul.f32.gmra.mxu0 %v539
    %v819 = vpop.f32.mrf.mxu0
    %v820 = vadd.f32 %v659, %v819
    %821 = vmatmul.f32.gmra.mxu0 %v541
    %v822 = vpop.f32.mrf.mxu0
    %v823 = vadd.f32 %v664, %v822
    %824 = vmatmul.f32.gmra.mxu0 %v543
    %v825 = vpop.f32.mrf.mxu0
    %v826 = vadd.f32 %v669, %v825
    %827 = vmatmul.f32.gmra.mxu0 %v545
    %v828 = vpop.f32.mrf.mxu0
    %v829 = vadd.f32 %v674, %v828
    %830 = vmatmul.f32.gmra.mxu0 %v547
    %v831 = vpop.f32.mrf.mxu0
    %v832 = vadd.f32 %v679, %v831
    %833 = vmatmul.f32.gmra.mxu0 %v549
    %v834 = vpop.f32.mrf.mxu0
    %v835 = vadd.f32 %v684, %v834
    %836 = vmatmul.f32.gmra.mxu0 %v551
    %v837 = vpop.f32.mrf.mxu0
    %v838 = vadd.f32 %v689, %v837
    %839 = vmatmul.f32.gmra.mxu0 %v553
    %v840 = vpop.f32.mrf.mxu0
    %v841 = vadd.f32 %v694, %v840
    %842 = vmatmul.f32.gmra.mxu0 %v555
    %v843 = vpop.f32.mrf.mxu0
    %v844 = vadd.f32 %v699, %v843
    %845 = vmatmul.f32.gmra.mxu0 %v557
    %v846 = vpop.f32.mrf.mxu0
    %v847 = vadd.f32 %v704, %v846
    %848 = vmatmul.f32.gmra.mxu0 %v559
    %v849 = vpop.f32.mrf.mxu0
    %v850 = vadd.f32 %v709, %v849
    %851 = vmatmul.f32.gmra.mxu0 %v561
    %v852 = vpop.f32.mrf.mxu0
    %v853 = vadd.f32 %v714, %v852
    %854 = vmatmul.f32.gmra.mxu0 %v563
    %v855 = vpop.f32.mrf.mxu0
    %v856 = vadd.f32 %v719, %v855
    %857 = vmatmul.f32.gmra.mxu0 %v565
    %v858 = vpop.f32.mrf.mxu0
    %v859 = vadd.f32 %v724, %v858
    %860 = vmatmul.f32.gmra.mxu0 %v567
    %v861 = vpop.f32.mrf.mxu0
    %v862 = vadd.f32 %v729, %v861
    %863 = vmatmul.f32.gmra.mxu0 %v569
    %v864 = vpop.f32.mrf.mxu0
    %v865 = vadd.f32 %v734, %v864
    %866 = vmatmul.f32.gmra.mxu0 %v571
    %v867 = vpop.f32.mrf.mxu0
    %v868 = vadd.f32 %v739, %v867
    %869 = vmatmul.f32.gmra.mxu0 %v573
    %v870 = vpop.f32.mrf.mxu0
    %v871 = vadd.f32 %v744, %v870
    %872 = vmatmul.f32.gmra.mxu0 %v575
    %v873 = vpop.f32.mrf.mxu0
    %v874 = vadd.f32 %v749, %v873
    %875 = vmatmul.f32.gmra.mxu0 %v577
    %v876 = vpop.f32.mrf.mxu0
    %v877 = vadd.f32 %v754, %v876
    %878 = vmatmul.f32.gmra.mxu0 %v579
    %v879 = vpop.f32.mrf.mxu0
    %v880 = vadd.f32 %v759, %v879
    %881 = vmatmul.f32.gmra.mxu0 %v581
    %v882 = vpop.f32.mrf.mxu0
    %v883 = vadd.f32 %v764, %v882
    %884 = vmatmul.f32.gmra.mxu0 %v583
    %v885 = vpop.f32.mrf.mxu0
    %v886 = vadd.f32 %v769, %v885
    %887 = vmatmul.f32.gmra.mxu0 %v585
    %v888 = vpop.f32.mrf.mxu0
    %v889 = vadd.f32 %v774, %v888
    %890 = vmatmul.f32.gmra.mxu0 %v587
    %v891 = vpop.f32.mrf.mxu0
    %v892 = vadd.f32 %v779, %v891
    %893 = vdwg.mxu0
    %894 = vmatpush.msra.mxu0 %v524
    %895 = vmatpush.msra.mxu0 %v523
    %896 = vmatpush.msra.mxu0 %v522
    %897 = vmatpush.msra.mxu0 %v521
    %898 = vmatpush.msra.mxu0 %v520
    %899 = vmatpush.msra.mxu0 %v519
    %900 = vmatpush.msra.mxu0 %v518
    %901 = vmatpush.msra.mxu0 %v517
    %902 = vmatpush.msra.mxu0 %v516
    %903 = vmatpush.msra.mxu0 %v515
    %904 = vmatpush.msra.mxu0 %v514
    %905 = vmatpush.msra.mxu0 %v513
    %906 = vmatpush.msra.mxu0 %v512
    %907 = vmatpush.msra.mxu0 %v511
    %908 = vmatpush.msra.mxu0 %v510
    %909 = vmatpush.msra.mxu0 %v509
    %910 = vmatmul.f32.gmra.mxu0 %v526
    %v911 = vpop.f32.mrf.mxu0
    %v912 = vadd.f32 %v799, %v911
    %913 = vmatmul.f32.gmra.mxu0 %v528
    %v914 = vpop.f32.mrf.mxu0
    %v915 = vadd.f32 %v802, %v914
    %916 = vmatmul.f32.gmra.mxu0 %v530
    %v917 = vpop.f32.mrf.mxu0
    %v918 = vadd.f32 %v805, %v917
    %919 = vmatmul.f32.gmra.mxu0 %v532
    %v920 = vpop.f32.mrf.mxu0
    %v921 = vadd.f32 %v808, %v920
    %922 = vmatmul.f32.gmra.mxu0 %v534
    %v923 = vpop.f32.mrf.mxu0
    %v924 = vadd.f32 %v811, %v923
    %925 = vmatmul.f32.gmra.mxu0 %v536
    %v926 = vpop.f32.mrf.mxu0
    %v927 = vadd.f32 %v814, %v926
    %928 = vmatmul.f32.gmra.mxu0 %v538
    %v929 = vpop.f32.mrf.mxu0
    %v930 = vadd.f32 %v817, %v929
    %931 = vmatmul.f32.gmra.mxu0 %v540
    %v932 = vpop.f32.mrf.mxu0
    %v933 = vadd.f32 %v820, %v932
    %934 = vmatmul.f32.gmra.mxu0 %v542
    %v935 = vpop.f32.mrf.mxu0
    %v936 = vadd.f32 %v823, %v935
    %937 = vmatmul.f32.gmra.mxu0 %v544
    %v938 = vpop.f32.mrf.mxu0
    %v939 = vadd.f32 %v826, %v938
    %940 = vmatmul.f32.gmra.mxu0 %v546
    %v941 = vpop.f32.mrf.mxu0
    %v942 = vadd.f32 %v829, %v941
    %943 = vmatmul.f32.gmra.mxu0 %v548
    %v944 = vpop.f32.mrf.mxu0
    %v945 = vadd.f32 %v832, %v944
    %946 = vmatmul.f32.gmra.mxu0 %v550
    %v947 = vpop.f32.mrf.mxu0
    %v948 = vadd.f32 %v835, %v947
    %949 = vmatmul.f32.gmra.mxu0 %v552
    %v950 = vpop.f32.mrf.mxu0
    %v951 = vadd.f32 %v838, %v950
    %952 = vmatmul.f32.gmra.mxu0 %v554
    %v953 = vpop.f32.mrf.mxu0
    %v954 = vadd.f32 %v841, %v953
    %955 = vmatmul.f32.gmra.mxu0 %v556
    %v956 = vpop.f32.mrf.mxu0
    %v957 = vadd.f32 %v844, %v956
    %958 = vmatmul.f32.gmra.mxu0 %v558
    %v959 = vpop.f32.mrf.mxu0
    %v960 = vadd.f32 %v847, %v959
    %961 = vmatmul.f32.gmra.mxu0 %v560
    %v962 = vpop.f32.mrf.mxu0
    %v963 = vadd.f32 %v850, %v962
    %964 = vmatmul.f32.gmra.mxu0 %v562
    %v965 = vpop.f32.mrf.mxu0
    %v966 = vadd.f32 %v853, %v965
    %967 = vmatmul.f32.gmra.mxu0 %v564
    %v968 = vpop.f32.mrf.mxu0
    %v969 = vadd.f32 %v856, %v968
    %970 = vmatmul.f32.gmra.mxu0 %v566
    %v971 = vpop.f32.mrf.mxu0
    %v972 = vadd.f32 %v859, %v971
    %973 = vmatmul.f32.gmra.mxu0 %v568
    %v974 = vpop.f32.mrf.mxu0
    %v975 = vadd.f32 %v862, %v974
    %976 = vmatmul.f32.gmra.mxu0 %v570
    %v977 = vpop.f32.mrf.mxu0
    %v978 = vadd.f32 %v865, %v977
    %979 = vmatmul.f32.gmra.mxu0 %v572
    %v980 = vpop.f32.mrf.mxu0
    %v981 = vadd.f32 %v868, %v980
    %982 = vmatmul.f32.gmra.mxu0 %v574
    %v983 = vpop.f32.mrf.mxu0
    %v984 = vadd.f32 %v871, %v983
    %985 = vmatmul.f32.gmra.mxu0 %v576
    %v986 = vpop.f32.mrf.mxu0
    %v987 = vadd.f32 %v874, %v986
    %988 = vmatmul.f32.gmra.mxu0 %v578
    %v989 = vpop.f32.mrf.mxu0
    %v990 = vadd.f32 %v877, %v989
    %991 = vmatmul.f32.gmra.mxu0 %v580
    %v992 = vpop.f32.mrf.mxu0
    %v993 = vadd.f32 %v880, %v992
    %994 = vmatmul.f32.gmra.mxu0 %v582
    %v995 = vpop.f32.mrf.mxu0
    %v996 = vadd.f32 %v883, %v995
    %997 = vmatmul.f32.gmra.mxu0 %v584
    %v998 = vpop.f32.mrf.mxu0
    %v999 = vadd.f32 %v886, %v998
    %1000 = vmatmul.f32.gmra.mxu0 %v586
    %v1001 = vpop.f32.mrf.mxu0
    %v1002 = vadd.f32 %v889, %v1001
    %1003 = vmatmul.f32.gmra.mxu0 %v588
    %v1004 = vpop.f32.mrf.mxu0
    %v1005 = vadd.f32 %v892, %v1004
    %1006 = vdwg.mxu0
    %v1007 = vmax.f32 %v912, 0.0
    %v1008 = vmax.f32 %v915, 0.0
    %v1009 = vmax.f32 %v918, 0.0
    %v1010 = vmax.f32 %v921, 0.0
    %v1011 = vmax.f32 %v924, 0.0
    %v1012 = vmax.f32 %v927, 0.0
    %v1013 = vmax.f32 %v930, 0.0
    %v1014 = vmax.f32 %v933, 0.0
    %v1015 = vmax.f32 %v936, 0.0
    %v1016 = vmax.f32 %v939, 0.0
    %v1017 = vmax.f32 %v942, 0.0
    %v1018 = vmax.f32 %v945, 0.0
    %v1019 = vmax.f32 %v948, 0.0
    %v1020 = vmax.f32 %v951, 0.0
    %v1021 = vmax.f32 %v954, 0.0
    %v1022 = vmax.f32 %v957, 0.0
    %v1023 = vmax.f32 %v960, 0.0
    %v1024 = vmax.f32 %v963, 0.0
    %v1025 = vmax.f32 %v966, 0.0
    %v1026 = vmax.f32 %v969, 0.0
    %v1027 = vmax.f32 %v972, 0.0
    %v1028 = vmax.f32 %v975, 0.0
    %v1029 = vmax.f32 %v978, 0.0
    %v1030 = vmax.f32 %v981, 0.0
    %v1031 = vmax.f32 %v984, 0.0
    %v1032 = vmax.f32 %v987, 0.0
    %v1033 = vmax.f32 %v990, 0.0
    %v1034 = vmax.f32 %v993, 0.0
    %v1035 = vmax.f32 %v996, 0.0
    %v1036 = vmax.f32 %v999, 0.0
    %v1037 = vmax.f32 %v1002, 0.0
    %v1038 = vmax.f32 %v1005, 0.0
    %v1039 = vld [vmem:[%s5] sm:$0xff]
    %v1040 = vld [vmem:[%s5 + $0x8] sm:$0xff]
    %v1041 = vld [vmem:[%s5 + $0x10] sm:$0xff]
    %v1042 = vld [vmem:[%s5 + $0x18] sm:$0xff]
    %v1043 = vld [vmem:[%s5 + $0x20] sm:$0xff]
    %v1044 = vld [vmem:[%s5 + $0x28] sm:$0xff]
    %v1045 = vld [vmem:[%s5 + $0x30] sm:$0xff]
    %v1046 = vld [vmem:[%s5 + $0x38] sm:$0xff]
    %v1047 = vld [vmem:[%s5 + $0x40] sm:$0xff]
    %v1048 = vld [vmem:[%s5 + $0x48] sm:$0xff]
    %v1049 = vld [vmem:[%s5 + $0x50] sm:$0xff]
    %v1050 = vld [vmem:[%s5 + $0x58] sm:$0xff]
    %v1051 = vld [vmem:[%s5 + $0x60] sm:$0xff]
    %v1052 = vld [vmem:[%s5 + $0x68] sm:$0xff]
    %v1053 = vld [vmem:[%s5 + $0x70] sm:$0xff]
    %v1054 = vld [vmem:[%s5 + $0x78] sm:$0xff]
    %v1055 = vld [vmem:[%s5 + $0x80] sm:$0xff]
    %v1056 = vld [vmem:[%s5 + $0x88] sm:$0xff]
    %v1057 = vld [vmem:[%s5 + $0x90] sm:$0xff]
    %v1058 = vld [vmem:[%s5 + $0x98] sm:$0xff]
    %v1059 = vld [vmem:[%s5 + $0xa0] sm:$0xff]
    %v1060 = vld [vmem:[%s5 + $0xa8] sm:$0xff]
    %v1061 = vld [vmem:[%s5 + $0xb0] sm:$0xff]
    %v1062 = vld [vmem:[%s5 + $0xb8] sm:$0xff]
    %v1063 = vld [vmem:[%s5 + $0xc0] sm:$0xff]
    %v1064 = vld [vmem:[%s5 + $0xc8] sm:$0xff]
    %v1065 = vld [vmem:[%s5 + $0xd0] sm:$0xff]
    %v1066 = vld [vmem:[%s5 + $0xd8] sm:$0xff]
    %v1067 = vld [vmem:[%s5 + $0xe0] sm:$0xff]
    %v1068 = vld [vmem:[%s5 + $0xe8] sm:$0xff]
    %v1069 = vld [vmem:[%s5 + $0xf0] sm:$0xff]
    %v1070 = vld [vmem:[%s5 + $0xf8] sm:$0xff]
    %v1071 = vld [vmem:[%s5 + $0x100] sm:$0xff]
    %v1072 = vld [vmem:[%s5 + $0x108] sm:$0xff]
    %v1073 = vld [vmem:[%s5 + $0x110] sm:$0xff]
    %v1074 = vld [vmem:[%s5 + $0x118] sm:$0xff]
    %v1075 = vld [vmem:[%s5 + $0x120] sm:$0xff]
    %v1076 = vld [vmem:[%s5 + $0x128] sm:$0xff]
    %v1077 = vld [vmem:[%s5 + $0x130] sm:$0xff]
    %v1078 = vld [vmem:[%s5 + $0x138] sm:$0xff]
    %v1079 = vld [vmem:[%s5 + $0x140] sm:$0xff]
    %v1080 = vld [vmem:[%s5 + $0x148] sm:$0xff]
    %v1081 = vld [vmem:[%s5 + $0x150] sm:$0xff]
    %v1082 = vld [vmem:[%s5 + $0x158] sm:$0xff]
    %v1083 = vld [vmem:[%s5 + $0x160] sm:$0xff]
    %v1084 = vld [vmem:[%s5 + $0x168] sm:$0xff]
    %v1085 = vld [vmem:[%s5 + $0x170] sm:$0xff]
    %v1086 = vld [vmem:[%s5 + $0x178] sm:$0xff]
    %v1087 = vld [vmem:[%s5 + $0x180] sm:$0xff]
    %v1088 = vld [vmem:[%s5 + $0x188] sm:$0xff]
    %v1089 = vld [vmem:[%s5 + $0x190] sm:$0xff]
    %v1090 = vld [vmem:[%s5 + $0x198] sm:$0xff]
    %v1091 = vld [vmem:[%s5 + $0x1a0] sm:$0xff]
    %v1092 = vld [vmem:[%s5 + $0x1a8] sm:$0xff]
    %v1093 = vld [vmem:[%s5 + $0x1b0] sm:$0xff]
    %v1094 = vld [vmem:[%s5 + $0x1b8] sm:$0xff]
    %v1095 = vld [vmem:[%s5 + $0x1c0] sm:$0xff]
    %v1096 = vld [vmem:[%s5 + $0x1c8] sm:$0xff]
    %v1097 = vld [vmem:[%s5 + $0x1d0] sm:$0xff]
    %v1098 = vld [vmem:[%s5 + $0x1d8] sm:$0xff]
    %v1099 = vld [vmem:[%s5 + $0x1e0] sm:$0xff]
    %v1100 = vld [vmem:[%s5 + $0x1e8] sm:$0xff]
    %v1101 = vld [vmem:[%s5 + $0x1f0] sm:$0xff]
    %v1102 = vld [vmem:[%s5 + $0x1f8] sm:$0xff]
    %v1103 = vld [vmem:[%s6] sm:$0xff]
    %v1104 = vld [vmem:[%s6 + $0x8] sm:$0xff]
    %v1105 = vld [vmem:[%s6 + $0x10] sm:$0xff]
    %v1106 = vld [vmem:[%s6 + $0x18] sm:$0xff]
    %v1107 = vld [vmem:[%s6 + $0x20] sm:$0xff]
    %v1108 = vld [vmem:[%s6 + $0x28] sm:$0xff]
    %v1109 = vld [vmem:[%s6 + $0x30] sm:$0xff]
    %v1110 = vld [vmem:[%s6 + $0x38] sm:$0xff]
    %v1111 = vld [vmem:[%s6 + $0x40] sm:$0xff]
    %v1112 = vld [vmem:[%s6 + $0x48] sm:$0xff]
    %v1113 = vld [vmem:[%s6 + $0x50] sm:$0xff]
    %v1114 = vld [vmem:[%s6 + $0x58] sm:$0xff]
    %v1115 = vld [vmem:[%s6 + $0x60] sm:$0xff]
    %v1116 = vld [vmem:[%s6 + $0x68] sm:$0xff]
    %v1117 = vld [vmem:[%s6 + $0x70] sm:$0xff]
    %v1118 = vld [vmem:[%s6 + $0x78] sm:$0xff]
    %v1119 = vld [vmem:[%s6 + $0x80] sm:$0xff]
    %v1120 = vld [vmem:[%s6 + $0x88] sm:$0xff]
    %v1121 = vld [vmem:[%s6 + $0x90] sm:$0xff]
    %v1122 = vld [vmem:[%s6 + $0x98] sm:$0xff]
    %v1123 = vld [vmem:[%s6 + $0xa0] sm:$0xff]
    %v1124 = vld [vmem:[%s6 + $0xa8] sm:$0xff]
    %v1125 = vld [vmem:[%s6 + $0xb0] sm:$0xff]
    %v1126 = vld [vmem:[%s6 + $0xb8] sm:$0xff]
    %v1127 = vld [vmem:[%s6 + $0xc0] sm:$0xff]
    %v1128 = vld [vmem:[%s6 + $0xc8] sm:$0xff]
    %v1129 = vld [vmem:[%s6 + $0xd0] sm:$0xff]
    %v1130 = vld [vmem:[%s6 + $0xd8] sm:$0xff]
    %v1131 = vld [vmem:[%s6 + $0xe0] sm:$0xff]
    %v1132 = vld [vmem:[%s6 + $0xe8] sm:$0xff]
    %v1133 = vld [vmem:[%s6 + $0xf0] sm:$0xff]
    %v1134 = vld [vmem:[%s6 + $0xf8] sm:$0xff]
    %1136 = vset.pattern.permute.xlu0 0
    %1137 = vperm.xlu0 %1136, %v1103
    %v1138 = vpop.permute.xlu0 %1137
    %1141 = vset.pattern.permute.xlu0 0
    %1142 = vperm.xlu0 %1141, %v1104
    %v1143 = vpop.permute.xlu0 %1142
    %1146 = vset.pattern.permute.xlu0 0
    %1147 = vperm.xlu0 %1146, %v1105
    %v1148 = vpop.permute.xlu0 %1147
    %1151 = vset.pattern.permute.xlu0 0
    %1152 = vperm.xlu0 %1151, %v1106
    %v1153 = vpop.permute.xlu0 %1152
    %1156 = vset.pattern.permute.xlu0 0
    %1157 = vperm.xlu0 %1156, %v1107
    %v1158 = vpop.permute.xlu0 %1157
    %1161 = vset.pattern.permute.xlu0 0
    %1162 = vperm.xlu0 %1161, %v1108
    %v1163 = vpop.permute.xlu0 %1162
    %1166 = vset.pattern.permute.xlu0 0
    %1167 = vperm.xlu0 %1166, %v1109
    %v1168 = vpop.permute.xlu0 %1167
    %1171 = vset.pattern.permute.xlu0 0
    %1172 = vperm.xlu0 %1171, %v1110
    %v1173 = vpop.permute.xlu0 %1172
    %1176 = vset.pattern.permute.xlu0 0
    %1177 = vperm.xlu0 %1176, %v1111
    %v1178 = vpop.permute.xlu0 %1177
    %1181 = vset.pattern.permute.xlu0 0
    %1182 = vperm.xlu0 %1181, %v1112
    %v1183 = vpop.permute.xlu0 %1182
    %1186 = vset.pattern.permute.xlu0 0
    %1187 = vperm.xlu0 %1186, %v1113
    %v1188 = vpop.permute.xlu0 %1187
    %1191 = vset.pattern.permute.xlu0 0
    %1192 = vperm.xlu0 %1191, %v1114
    %v1193 = vpop.permute.xlu0 %1192
    %1196 = vset.pattern.permute.xlu0 0
    %1197 = vperm.xlu0 %1196, %v1115
    %v1198 = vpop.permute.xlu0 %1197
    %1201 = vset.pattern.permute.xlu0 0
    %1202 = vperm.xlu0 %1201, %v1116
    %v1203 = vpop.permute.xlu0 %1202
    %1206 = vset.pattern.permute.xlu0 0
    %1207 = vperm.xlu0 %1206, %v1117
    %v1208 = vpop.permute.xlu0 %1207
    %1211 = vset.pattern.permute.xlu0 0
    %1212 = vperm.xlu0 %1211, %v1118
    %v1213 = vpop.permute.xlu0 %1212
    %1216 = vset.pattern.permute.xlu0 0
    %1217 = vperm.xlu0 %1216, %v1119
    %v1218 = vpop.permute.xlu0 %1217
    %1221 = vset.pattern.permute.xlu0 0
    %1222 = vperm.xlu0 %1221, %v1120
    %v1223 = vpop.permute.xlu0 %1222
    %1226 = vset.pattern.permute.xlu0 0
    %1227 = vperm.xlu0 %1226, %v1121
    %v1228 = vpop.permute.xlu0 %1227
    %1231 = vset.pattern.permute.xlu0 0
    %1232 = vperm.xlu0 %1231, %v1122
    %v1233 = vpop.permute.xlu0 %1232
    %1236 = vset.pattern.permute.xlu0 0
    %1237 = vperm.xlu0 %1236, %v1123
    %v1238 = vpop.permute.xlu0 %1237
    %1241 = vset.pattern.permute.xlu0 0
    %1242 = vperm.xlu0 %1241, %v1124
    %v1243 = vpop.permute.xlu0 %1242
    %1246 = vset.pattern.permute.xlu0 0
    %1247 = vperm.xlu0 %1246, %v1125
    %v1248 = vpop.permute.xlu0 %1247
    %1251 = vset.pattern.permute.xlu0 0
    %1252 = vperm.xlu0 %1251, %v1126
    %v1253 = vpop.permute.xlu0 %1252
    %1256 = vset.pattern.permute.xlu0 0
    %1257 = vperm.xlu0 %1256, %v1127
    %v1258 = vpop.permute.xlu0 %1257
    %1261 = vset.pattern.permute.xlu0 0
    %1262 = vperm.xlu0 %1261, %v1128
    %v1263 = vpop.permute.xlu0 %1262
    %1266 = vset.pattern.permute.xlu0 0
    %1267 = vperm.xlu0 %1266, %v1129
    %v1268 = vpop.permute.xlu0 %1267
    %1271 = vset.pattern.permute.xlu0 0
    %1272 = vperm.xlu0 %1271, %v1130
    %v1273 = vpop.permute.xlu0 %1272
    %1276 = vset.pattern.permute.xlu0 0
    %1277 = vperm.xlu0 %1276, %v1131
    %v1278 = vpop.permute.xlu0 %1277
    %1281 = vset.pattern.permute.xlu0 0
    %1282 = vperm.xlu0 %1281, %v1132
    %v1283 = vpop.permute.xlu0 %1282
    %1286 = vset.pattern.permute.xlu0 0
    %1287 = vperm.xlu0 %1286, %v1133
    %v1288 = vpop.permute.xlu0 %1287
    %1291 = vset.pattern.permute.xlu0 0
    %1292 = vperm.xlu0 %1291, %v1134
    %v1293 = vpop.permute.xlu0 %1292
    %1295 = vmatpush.msra.mxu0 %v1022
    %1296 = vmatpush.msra.mxu0 %v1021
    %1297 = vmatpush.msra.mxu0 %v1020
    %1298 = vmatpush.msra.mxu0 %v1019
    %1299 = vmatpush.msra.mxu0 %v1018
    %1300 = vmatpush.msra.mxu0 %v1017
    %1301 = vmatpush.msra.mxu0 %v1016
    %1302 = vmatpush.msra.mxu0 %v1015
    %1303 = vmatpush.msra.mxu0 %v1014
    %1304 = vmatpush.msra.mxu0 %v1013
    %1305 = vmatpush.msra.mxu0 %v1012
    %1306 = vmatpush.msra.mxu0 %v1011
    %1307 = vmatpush.msra.mxu0 %v1010
    %1308 = vmatpush.msra.mxu0 %v1009
    %1309 = vmatpush.msra.mxu0 %v1008
    %1310 = vmatpush.msra.mxu0 %v1007
    %1311 = vmatmul.f32.gmra.mxu0 %v1039
    %v1312 = vpop.f32.mrf.mxu0
    %v1313 = vadd.f32 %v1138, %v1312
    %1314 = vmatmul.f32.gmra.mxu0 %v1041
    %v1315 = vpop.f32.mrf.mxu0
    %v1316 = vadd.f32 %v1143, %v1315
    %1317 = vmatmul.f32.gmra.mxu0 %v1043
    %v1318 = vpop.f32.mrf.mxu0
    %v1319 = vadd.f32 %v1148, %v1318
    %1320 = vmatmul.f32.gmra.mxu0 %v1045
    %v1321 = vpop.f32.mrf.mxu0
    %v1322 = vadd.f32 %v1153, %v1321
    %1323 = vmatmul.f32.gmra.mxu0 %v1047
    %v1324 = vpop.f32.mrf.mxu0
    %v1325 = vadd.f32 %v1158, %v1324
    %1326 = vmatmul.f32.gmra.mxu0 %v1049
    %v1327 = vpop.f32.mrf.mxu0
    %v1328 = vadd.f32 %v1163, %v1327
    %1329 = vmatmul.f32.gmra.mxu0 %v1051
    %v1330 = vpop.f32.mrf.mxu0
    %v1331 = vadd.f32 %v1168, %v1330
    %1332 = vmatmul.f32.gmra.mxu0 %v1053
    %v1333 = vpop.f32.mrf.mxu0
    %v1334 = vadd.f32 %v1173, %v1333
    %1335 = vmatmul.f32.gmra.mxu0 %v1055
    %v1336 = vpop.f32.mrf.mxu0
    %v1337 = vadd.f32 %v1178, %v1336
    %1338 = vmatmul.f32.gmra.mxu0 %v1057
    %v1339 = vpop.f32.mrf.mxu0
    %v1340 = vadd.f32 %v1183, %v1339
    %1341 = vmatmul.f32.gmra.mxu0 %v1059
    %v1342 = vpop.f32.mrf.mxu0
    %v1343 = vadd.f32 %v1188, %v1342
    %1344 = vmatmul.f32.gmra.mxu0 %v1061
    %v1345 = vpop.f32.mrf.mxu0
    %v1346 = vadd.f32 %v1193, %v1345
    %1347 = vmatmul.f32.gmra.mxu0 %v1063
    %v1348 = vpop.f32.mrf.mxu0
    %v1349 = vadd.f32 %v1198, %v1348
    %1350 = vmatmul.f32.gmra.mxu0 %v1065
    %v1351 = vpop.f32.mrf.mxu0
    %v1352 = vadd.f32 %v1203, %v1351
    %1353 = vmatmul.f32.gmra.mxu0 %v1067
    %v1354 = vpop.f32.mrf.mxu0
    %v1355 = vadd.f32 %v1208, %v1354
    %1356 = vmatmul.f32.gmra.mxu0 %v1069
    %v1357 = vpop.f32.mrf.mxu0
    %v1358 = vadd.f32 %v1213, %v1357
    %1359 = vmatmul.f32.gmra.mxu0 %v1071
    %v1360 = vpop.f32.mrf.mxu0
    %v1361 = vadd.f32 %v1218, %v1360
    %1362 = vmatmul.f32.gmra.mxu0 %v1073
    %v1363 = vpop.f32.mrf.mxu0
    %v1364 = vadd.f32 %v1223, %v1363
    %1365 = vmatmul.f32.gmra.mxu0 %v1075
    %v1366 = vpop.f32.mrf.mxu0
    %v1367 = vadd.f32 %v1228, %v1366
    %1368 = vmatmul.f32.gmra.mxu0 %v1077
    %v1369 = vpop.f32.mrf.mxu0
    %v1370 = vadd.f32 %v1233, %v1369
    %1371 = vmatmul.f32.gmra.mxu0 %v1079
    %v1372 = vpop.f32.mrf.mxu0
    %v1373 = vadd.f32 %v1238, %v1372
    %1374 = vmatmul.f32.gmra.mxu0 %v1081
    %v1375 = vpop.f32.mrf.mxu0
    %v1376 = vadd.f32 %v1243, %v1375
    %1377 = vmatmul.f32.gmra.mxu0 %v1083
    %v1378 = vpop.f32.mrf.mxu0
    %v1379 = vadd.f32 %v1248, %v1378
    %1380 = vmatmul.f32.gmra.mxu0 %v1085
    %v1381 = vpop.f32.mrf.mxu0
    %v1382 = vadd.f32 %v1253, %v1381
    %1383 = vmatmul.f32.gmra.mxu0 %v1087
    %v1384 = vpop.f32.mrf.mxu0
    %v1385 = vadd.f32 %v1258, %v1384
    %1386 = vmatmul.f32.gmra.mxu0 %v1089
    %v1387 = vpop.f32.mrf.mxu0
    %v1388 = vadd.f32 %v1263, %v1387
    %1389 = vmatmul.f32.gmra.mxu0 %v1091
    %v1390 = vpop.f32.mrf.mxu0
    %v1391 = vadd.f32 %v1268, %v1390
    %1392 = vmatmul.f32.gmra.mxu0 %v1093
    %v1393 = vpop.f32.mrf.mxu0
    %v1394 = vadd.f32 %v1273, %v1393
    %1395 = vmatmul.f32.gmra.mxu0 %v1095
    %v1396 = vpop.f32.mrf.mxu0
    %v1397 = vadd.f32 %v1278, %v1396
    %1398 = vmatmul.f32.gmra.mxu0 %v1097
    %v1399 = vpop.f32.mrf.mxu0
    %v1400 = vadd.f32 %v1283, %v1399
    %1401 = vmatmul.f32.gmra.mxu0 %v1099
    %v1402 = vpop.f32.mrf.mxu0
    %v1403 = vadd.f32 %v1288, %v1402
    %1404 = vmatmul.f32.gmra.mxu0 %v1101
    %v1405 = vpop.f32.mrf.mxu0
    %v1406 = vadd.f32 %v1293, %v1405
    %1407 = vdwg.mxu0
    %1408 = vmatpush.msra.mxu0 %v1038
    %1409 = vmatpush.msra.mxu0 %v1037
    %1410 = vmatpush.msra.mxu0 %v1036
    %1411 = vmatpush.msra.mxu0 %v1035
    %1412 = vmatpush.msra.mxu0 %v1034
    %1413 = vmatpush.msra.mxu0 %v1033
    %1414 = vmatpush.msra.mxu0 %v1032
    %1415 = vmatpush.msra.mxu0 %v1031
    %1416 = vmatpush.msra.mxu0 %v1030
    %1417 = vmatpush.msra.mxu0 %v1029
    %1418 = vmatpush.msra.mxu0 %v1028
    %1419 = vmatpush.msra.mxu0 %v1027
    %1420 = vmatpush.msra.mxu0 %v1026
    %1421 = vmatpush.msra.mxu0 %v1025
    %1422 = vmatpush.msra.mxu0 %v1024
    %1423 = vmatpush.msra.mxu0 %v1023
    %1424 = vmatmul.f32.gmra.mxu0 %v1040
    %v1425 = vpop.f32.mrf.mxu0
    %v1426 = vadd.f32 %v1313, %v1425
    %1427 = vmatmul.f32.gmra.mxu0 %v1042
    %v1428 = vpop.f32.mrf.mxu0
    %v1429 = vadd.f32 %v1316, %v1428
    %1430 = vmatmul.f32.gmra.mxu0 %v1044
    %v1431 = vpop.f32.mrf.mxu0
    %v1432 = vadd.f32 %v1319, %v1431
    %1433 = vmatmul.f32.gmra.mxu0 %v1046
    %v1434 = vpop.f32.mrf.mxu0
    %v1435 = vadd.f32 %v1322, %v1434
    %1436 = vmatmul.f32.gmra.mxu0 %v1048
    %v1437 = vpop.f32.mrf.mxu0
    %v1438 = vadd.f32 %v1325, %v1437
    %1439 = vmatmul.f32.gmra.mxu0 %v1050
    %v1440 = vpop.f32.mrf.mxu0
    %v1441 = vadd.f32 %v1328, %v1440
    %1442 = vmatmul.f32.gmra.mxu0 %v1052
    %v1443 = vpop.f32.mrf.mxu0
    %v1444 = vadd.f32 %v1331, %v1443
    %1445 = vmatmul.f32.gmra.mxu0 %v1054
    %v1446 = vpop.f32.mrf.mxu0
    %v1447 = vadd.f32 %v1334, %v1446
    %1448 = vmatmul.f32.gmra.mxu0 %v1056
    %v1449 = vpop.f32.mrf.mxu0
    %v1450 = vadd.f32 %v1337, %v1449
    %1451 = vmatmul.f32.gmra.mxu0 %v1058
    %v1452 = vpop.f32.mrf.mxu0
    %v1453 = vadd.f32 %v1340, %v1452
    %1454 = vmatmul.f32.gmra.mxu0 %v1060
    %v1455 = vpop.f32.mrf.mxu0
    %v1456 = vadd.f32 %v1343, %v1455
    %1457 = vmatmul.f32.gmra.mxu0 %v1062
    %v1458 = vpop.f32.mrf.mxu0
    %v1459 = vadd.f32 %v1346, %v1458
    %1460 = vmatmul.f32.gmra.mxu0 %v1064
    %v1461 = vpop.f32.mrf.mxu0
    %v1462 = vadd.f32 %v1349, %v1461
    %1463 = vmatmul.f32.gmra.mxu0 %v1066
    %v1464 = vpop.f32.mrf.mxu0
    %v1465 = vadd.f32 %v1352, %v1464
    %1466 = vmatmul.f32.gmra.mxu0 %v1068
    %v1467 = vpop.f32.mrf.mxu0
    %v1468 = vadd.f32 %v1355, %v1467
    %1469 = vmatmul.f32.gmra.mxu0 %v1070
    %v1470 = vpop.f32.mrf.mxu0
    %v1471 = vadd.f32 %v1358, %v1470
    %1472 = vmatmul.f32.gmra.mxu0 %v1072
    %v1473 = vpop.f32.mrf.mxu0
    %v1474 = vadd.f32 %v1361, %v1473
    %1475 = vmatmul.f32.gmra.mxu0 %v1074
    %v1476 = vpop.f32.mrf.mxu0
    %v1477 = vadd.f32 %v1364, %v1476
    %1478 = vmatmul.f32.gmra.mxu0 %v1076
    %v1479 = vpop.f32.mrf.mxu0
    %v1480 = vadd.f32 %v1367, %v1479
    %1481 = vmatmul.f32.gmra.mxu0 %v1078
    %v1482 = vpop.f32.mrf.mxu0
    %v1483 = vadd.f32 %v1370, %v1482
    %1484 = vmatmul.f32.gmra.mxu0 %v1080
    %v1485 = vpop.f32.mrf.mxu0
    %v1486 = vadd.f32 %v1373, %v1485
    %1487 = vmatmul.f32.gmra.mxu0 %v1082
    %v1488 = vpop.f32.mrf.mxu0
    %v1489 = vadd.f32 %v1376, %v1488
    %1490 = vmatmul.f32.gmra.mxu0 %v1084
    %v1491 = vpop.f32.mrf.mxu0
    %v1492 = vadd.f32 %v1379, %v1491
    %1493 = vmatmul.f32.gmra.mxu0 %v1086
    %v1494 = vpop.f32.mrf.mxu0
    %v1495 = vadd.f32 %v1382, %v1494
    %1496 = vmatmul.f32.gmra.mxu0 %v1088
    %v1497 = vpop.f32.mrf.mxu0
    %v1498 = vadd.f32 %v1385, %v1497
    %1499 = vmatmul.f32.gmra.mxu0 %v1090
    %v1500 = vpop.f32.mrf.mxu0
    %v1501 = vadd.f32 %v1388, %v1500
    %1502 = vmatmul.f32.gmra.mxu0 %v1092
    %v1503 = vpop.f32.mrf.mxu0
    %v1504 = vadd.f32 %v1391, %v1503
    %1505 = vmatmul.f32.gmra.mxu0 %v1094
    %v1506 = vpop.f32.mrf.mxu0
    %v1507 = vadd.f32 %v1394, %v1506
    %1508 = vmatmul.f32.gmra.mxu0 %v1096
    %v1509 = vpop.f32.mrf.mxu0
    %v1510 = vadd.f32 %v1397, %v1509
    %1511 = vmatmul.f32.gmra.mxu0 %v1098
    %v1512 = vpop.f32.mrf.mxu0
    %v1513 = vadd.f32 %v1400, %v1512
    %1514 = vmatmul.f32.gmra.mxu0 %v1100
    %v1515 = vpop.f32.mrf.mxu0
    %v1516 = vadd.f32 %v1403, %v1515
    %1517 = vmatmul.f32.gmra.mxu0 %v1102
    %v1518 = vpop.f32.mrf.mxu0
    %v1519 = vadd.f32 %v1406, %v1518
    %1520 = vdwg.mxu0
    %v1521 = vmax.f32 %v1426, 0.0
    %v1522 = vmax.f32 %v1429, 0.0
    %v1523 = vmax.f32 %v1432, 0.0
    %v1524 = vmax.f32 %v1435, 0.0
    %v1525 = vmax.f32 %v1438, 0.0
    %v1526 = vmax.f32 %v1441, 0.0
    %v1527 = vmax.f32 %v1444, 0.0
    %v1528 = vmax.f32 %v1447, 0.0
    %v1529 = vmax.f32 %v1450, 0.0
    %v1530 = vmax.f32 %v1453, 0.0
    %v1531 = vmax.f32 %v1456, 0.0
    %v1532 = vmax.f32 %v1459, 0.0
    %v1533 = vmax.f32 %v1462, 0.0
    %v1534 = vmax.f32 %v1465, 0.0
    %v1535 = vmax.f32 %v1468, 0.0
    %v1536 = vmax.f32 %v1471, 0.0
    %v1537 = vmax.f32 %v1474, 0.0
    %v1538 = vmax.f32 %v1477, 0.0
    %v1539 = vmax.f32 %v1480, 0.0
    %v1540 = vmax.f32 %v1483, 0.0
    %v1541 = vmax.f32 %v1486, 0.0
    %v1542 = vmax.f32 %v1489, 0.0
    %v1543 = vmax.f32 %v1492, 0.0
    %v1544 = vmax.f32 %v1495, 0.0
    %v1545 = vmax.f32 %v1498, 0.0
    %v1546 = vmax.f32 %v1501, 0.0
    %v1547 = vmax.f32 %v1504, 0.0
    %v1548 = vmax.f32 %v1507, 0.0
    %v1549 = vmax.f32 %v1510, 0.0
    %v1550 = vmax.f32 %v1513, 0.0
    %v1551 = vmax.f32 %v1516, 0.0
    %v1552 = vmax.f32 %v1519, 0.0
    %v1553 = vld [vmem:[%s7] sm:$0xff]
    %v1554 = vld [vmem:[%s7 + $0x8] sm:$0xff]
    %v1555 = vld [vmem:[%s7 + $0x10] sm:$0xff]
    %v1556 = vld [vmem:[%s7 + $0x18] sm:$0xff]
    %v1557 = vld [vmem:[%s7 + $0x20] sm:$0xff]
    %v1558 = vld [vmem:[%s7 + $0x28] sm:$0xff]
    %v1559 = vld [vmem:[%s7 + $0x30] sm:$0xff]
    %v1560 = vld [vmem:[%s7 + $0x38] sm:$0xff]
    %v1561 = vld [vmem:[%s8] sm:$0xff]
    %v1562 = vld [vmem:[%s8 + $0x8] sm:$0xff]
    %v1563 = vld [vmem:[%s8 + $0x10] sm:$0xff]
    %v1564 = vld [vmem:[%s8 + $0x18] sm:$0xff]
    %1566 = vset.pattern.permute.xlu0 0
    %1567 = vperm.xlu0 %1566, %v1561
    %v1568 = vpop.permute.xlu0 %1567
    %1571 = vset.pattern.permute.xlu0 0
    %1572 = vperm.xlu0 %1571, %v1562
    %v1573 = vpop.permute.xlu0 %1572
    %1576 = vset.pattern.permute.xlu0 0
    %1577 = vperm.xlu0 %1576, %v1563
    %v1578 = vpop.permute.xlu0 %1577
    %1581 = vset.pattern.permute.xlu0 0
    %1582 = vperm.xlu0 %1581, %v1564
    %v1583 = vpop.permute.xlu0 %1582
    %1585 = vmatpush.msra.mxu0 %v1536
    %1586 = vmatpush.msra.mxu0 %v1535
    %1587 = vmatpush.msra.mxu0 %v1534
    %1588 = vmatpush.msra.mxu0 %v1533
    %1589 = vmatpush.msra.mxu0 %v1532
    %1590 = vmatpush.msra.mxu0 %v1531
    %1591 = vmatpush.msra.mxu0 %v1530
    %1592 = vmatpush.msra.mxu0 %v1529
    %1593 = vmatpush.msra.mxu0 %v1528
    %1594 = vmatpush.msra.mxu0 %v1527
    %1595 = vmatpush.msra.mxu0 %v1526
    %1596 = vmatpush.msra.mxu0 %v1525
    %1597 = vmatpush.msra.mxu0 %v1524
    %1598 = vmatpush.msra.mxu0 %v1523
    %1599 = vmatpush.msra.mxu0 %v1522
    %1600 = vmatpush.msra.mxu0 %v1521
    %1601 = vmatmul.f32.gmra.mxu0 %v1553
    %v1602 = vpop.f32.mrf.mxu0
    %v1603 = vadd.f32 %v1568, %v1602
    %1604 = vmatmul.f32.gmra.mxu0 %v1555
    %v1605 = vpop.f32.mrf.mxu0
    %v1606 = vadd.f32 %v1573, %v1605
    %1607 = vmatmul.f32.gmra.mxu0 %v1557
    %v1608 = vpop.f32.mrf.mxu0
    %v1609 = vadd.f32 %v1578, %v1608
    %1610 = vmatmul.f32.gmra.mxu0 %v1559
    %v1611 = vpop.f32.mrf.mxu0
    %v1612 = vadd.f32 %v1583, %v1611
    %1613 = vdwg.mxu0
    %1614 = vmatpush.msra.mxu0 %v1552
    %1615 = vmatpush.msra.mxu0 %v1551
    %1616 = vmatpush.msra.mxu0 %v1550
    %1617 = vmatpush.msra.mxu0 %v1549
    %1618 = vmatpush.msra.mxu0 %v1548
    %1619 = vmatpush.msra.mxu0 %v1547
    %1620 = vmatpush.msra.mxu0 %v1546
    %1621 = vmatpush.msra.mxu0 %v1545
    %1622 = vmatpush.msra.mxu0 %v1544
    %1623 = vmatpush.msra.mxu0 %v1543
    %1624 = vmatpush.msra.mxu0 %v1542
    %1625 = vmatpush.msra.mxu0 %v1541
    %1626 = vmatpush.msra.mxu0 %v1540
    %1627 = vmatpush.msra.mxu0 %v1539
    %1628 = vmatpush.msra.mxu0 %v1538
    %1629 = vmatpush.msra.mxu0 %v1537
    %1630 = vmatmul.f32.gmra.mxu0 %v1554
    %v1631 = vpop.f32.mrf.mxu0
    %v1632 = vadd.f32 %v1603, %v1631
    %1633 = vmatmul.f32.gmra.mxu0 %v1556
    %v1634 = vpop.f32.mrf.mxu0
    %v1635 = vadd.f32 %v1606, %v1634
    %1636 = vmatmul.f32.gmra.mxu0 %v1558
    %v1637 = vpop.f32.mrf.mxu0
    %v1638 = vadd.f32 %v1609, %v1637
    %1639 = vmatmul.f32.gmra.mxu0 %v1560
    %v1640 = vpop.f32.mrf.mxu0
    %v1641 = vadd.f32 %v1612, %v1640
    %1642 = vdwg.mxu0
    %v1644 = vsel %vm283, %v52, 0
    %v1647 = vsel %vm283, %v53, 0
    %v1650 = vsel %vm283, %v54, 0
    %v1653 = vsel %vm283, %v55, 0
    %1655 = vmatpush.msra.mxu0 0.0
    %1656 = vmatpush.msra.mxu0 0.0
    %1657 = vmatpush.msra.mxu0 0.0
    %1658 = vmatpush.msra.mxu0 0.0
    %1659 = vmatpush.msra.mxu0 0.0
    %1660 = vmatpush.msra.mxu0 0.0
    %1661 = vmatpush.msra.mxu0 0.0
    %1662 = vmatpush.msra.mxu0 0.0
    %1663 = vmatpush.msra.mxu0 0.0
    %1664 = vmatpush.msra.mxu0 0.0
    %1665 = vmatpush.msra.mxu0 0.0
    %1666 = vmatpush.msra.mxu0 0.0
    %1667 = vmatpush.msra.mxu0 0.0
    %1668 = vmatpush.msra.mxu0 %v58
    %1669 = vmatpush.msra.mxu0 %v57
    %1670 = vmatpush.msra.mxu0 %v56
    %1671 = vmatmul.f32.gmra.mxu0 %v1644
    %v1672 = vpop.f32.mrf.mxu0
    %v1673 = vadd.f32 0.0, %v1672
    %1674 = vmatmul.f32.gmra.mxu0 %v1647
    %v1675 = vpop.f32.mrf.mxu0
    %v1676 = vadd.f32 0.0, %v1675
    %1677 = vmatmul.f32.gmra.mxu0 %v1650
    %v1678 = vpop.f32.mrf.mxu0
    %v1679 = vadd.f32 0.0, %v1678
    %1680 = vmatmul.f32.gmra.mxu0 %v1653
    %v1681 = vpop.f32.mrf.mxu0
    %v1682 = vadd.f32 0.0, %v1681
    %1683 = vdwg.mxu0
    %v1684 = vadd.f32 %v1632, %v1673
    %v1685 = vadd.f32 %v1635, %v1676
    %v1686 = vadd.f32 %v1638, %v1679
    %v1687 = vadd.f32 %v1641, %v1682
    %1688 = vst [vmem:[#allocation5] sm:$0xff] %v1684
    %1689 = vst [vmem:[#allocation5 + $0x8] sm:$0xff] %v1685
    %1690 = vst [vmem:[#allocation5 + $0x10] sm:$0xff] %v1686
    %1691 = vst [vmem:[#allocation5 + $0x18] sm:$0xff] %v1687
    // Predicated region
    $region46: #{tpu_custom_call.1} parent=1 // pred_check
      _
    $region47: #{tpu_custom_call.1} parent=1 // pred_check_branch
      %1693 = sbr.rel (0) target = $region49
    $region48: #{tpu_custom_call.1} parent=1 // pred_region
      %1695 = vsyncadd [#allocation4], 0
      %s1696 = sshll.u32 [#allocation5], 4
      %s1697 = int_to_ptr.vmem [resolvable:$true] %s1696
      %s1698 = sshll.u32 %s10, 4
      %s1699 = int_to_ptr.hbm [resolvable:$true] %s1698
      %1704 = dma.vmem_to_hbm [thread:$0]  %s1697, 512, %s1699, [#allocation4], 128, 128, 8
    $region49: #{tpu_custom_call.1} parent=1 // pred_fallthru
      _
    // Predicated region
    $region50: #{tpu_custom_call.1} parent=1 // pred_check
      _
    $region51: #{tpu_custom_call.1} parent=1 // pred_check_branch
      %1706 = sbr.rel (0) target = $region53
    $region52: #{tpu_custom_call.1} parent=1 // pred_region
      %1708 = dma.done [#allocation4], 512
    $region53: #{tpu_custom_call.1} parent=1 // pred_fallthru
      _
    %1709 = vsyncpa [#allocation3], 1
    %1710 = vsyncpa [#allocation4], 1

</llo_original>
